<compile_context>
chip_gen: v7x
topology: tpu7x:2x2x1
jax: 0.10.0
libtpu: 0.0.40
codegen_flags: <defaults>
</compile_context>

<pallas_src>
import functools

import jax
import jax.numpy as jnp
from jax.experimental import pallas as pl
from jax.experimental.pallas import tpu as pltpu

D_IN = 768
D_OUT = 768

_INV_SQRT2 = 0.7071067811865476


def _mlp_kernel(x_ref, w_ref, b_ref, o_ref):
    # x_ref: (TM, D_IN) f32   w_ref: (D_IN, D_OUT) bf16
    # b_ref: (1, D_OUT) f32   o_ref: (TM, D_OUT)  (x dtype)
    x_bf16 = x_ref[...].astype(jnp.bfloat16)  # cheap VPU cast, hidden under MXU/DMA
    y = jnp.dot(x_bf16, w_ref[...], preferred_element_type=jnp.float32)
    y = y + b_ref[...]  # f32 bias add
    # Exact (erf-based) GELU, matching torch.nn.GELU() default, in f32.
    g = 0.5 * y * (1.0 + jax.lax.erf(y * _INV_SQRT2))
    o_ref[...] = g.astype(o_ref.dtype)


def _choose_tm(m, tm_max):
    """Big row tile for throughput, but >=2 grid steps when possible so the
    'parallel' axis can be split across both TensorCores on v7x."""
    if m >= 2 * tm_max:
        return tm_max
    tm = max(8, -(-m // 2))       # roughly half of M -> 2 tiles
    tm = -(-tm // 8) * 8          # round up to a sublane multiple
    return min(tm, tm_max)


@functools.partial(jax.jit, static_argnames=("tm_max",))
def mlp_forward(x, w_t, b, *, tm_max=512):
    """x: (..., 768); w_t: (768, 768) already transposed (in, out), ideally bf16;
    b: (768,). Returns gelu(x @ w_t + b) in x.dtype."""
    orig_shape = x.shape
    x2 = x.reshape(-1, D_IN)
    M = x2.shape[0]

    tm = _choose_tm(M, tm_max)
    grid_m = pl.cdiv(M, tm)

    w_bf16 = w_t.astype(jnp.bfloat16)               # no-op if already stored bf16
    b2 = b.reshape(1, D_OUT).astype(jnp.float32)

    out_dtype = x.dtype
    bytes_accessed = (
        x2.size * x2.dtype.itemsize
        + w_bf16.size * 2
        + b2.size * 4
        + M * D_OUT * jnp.dtype(out_dtype).itemsize
    )

    out = pl.pallas_call(
        _mlp_kernel,
        out_shape=jax.ShapeDtypeStruct((M, D_OUT), out_dtype),
        grid_spec=pltpu.PrefetchScalarGridSpec(
            num_scalar_prefetch=0,
            grid=(grid_m,),
            in_specs=[
                pl.BlockSpec((tm, D_IN), lambda i: (i, 0)),
                pl.BlockSpec((D_IN, D_OUT), lambda i: (0, 0)),   # constant block: fetched once
                pl.BlockSpec((1, D_OUT), lambda i: (0, 0)),      # constant block: fetched once
            ],
            out_specs=pl.BlockSpec((tm, D_OUT), lambda i: (i, 0)),
        ),
        compiler_params=pltpu.CompilerParams(
            dimension_semantics=("parallel",),
        ),
        cost_estimate=pl.CostEstimate(
            flops=2 * M * D_IN * D_OUT,
            transcendentals=M * D_OUT,
            bytes_accessed=bytes_accessed,
        ),
    )(x2, w_bf16, b2)

    return out.reshape(*orig_shape[:-1], D_OUT)


def init_params(key):
    """Deterministic init matching nn.Linear(768, 768) default (U[-1/sqrt(768), 1/sqrt(768)])."""
    kw, kb = jax.random.split(key)
    bound = 1.0 / jnp.sqrt(jnp.float32(D_IN))
    w = jax.random.uniform(kw, (D_OUT, D_IN), jnp.float32, -bound, bound)  # torch layout (out, in)
    b = jax.random.uniform(kb, (D_OUT,), jnp.float32, -bound, bound)
    return w, b


if __name__ == "__main__":
    key = jax.random.PRNGKey(0)
    k_x, k_p = jax.random.split(key)

    batch, seq = 2, 8
    x = jax.random.normal(k_x, (batch, seq, D_IN), jnp.float32)

    w, b = init_params(k_p)
    w_t = w.T                              # (in, out) so the kernel computes x @ w_t
    w_t_bf16 = w_t.astype(jnp.bfloat16)    # weight lives in HBM as bf16 (cast once)

    y = mlp_forward(x, w_t_bf16, b)
    jax.block_until_ready(y)

    # Pure-JAX f32 reference of Linear + exact GELU.  The kernel uses bf16 MXU
    # operands with f32 accumulation, so compare at bf16-level tolerance.
    lin = x @ w_t + b
    y_ref = 0.5 * lin * (1.0 + jax.lax.erf(lin * _INV_SQRT2))
    assert y.shape == (batch, seq, D_OUT)
    assert y.dtype == x.dtype
    assert jnp.allclose(y, y_ref, atol=5e-2, rtol=5e-2)

    print("KERNEL_OK")
</pallas_src>

<mosaic_0001>
module attributes {stable_mosaic.version = 11 : i64} {
  func.func @_mlp_kernel(%arg0: i32, %arg1: memref<8x768xf32, #tpu.memory_space<vmem>>, %arg2: memref<768x768xbf16, #tpu.memory_space<vmem>>, %arg3: memref<1x768xf32, #tpu.memory_space<vmem>>, %arg4: memref<8x768xf32, #tpu.memory_space<vmem>>) attributes {dimension_semantics = [#tpu.dimension_semantics<parallel>], iteration_bounds = array<i64: 2>, scalar_prefetch = 0 : i64, scratch_operands = 0 : i64, tpu.core_type = #tpu.core_type<tc>, window_params = [{transform_indices = @transform_0, window_bounds = array<i64: 8, 768>}, {pipeline_mode = #tpu.pipeline_mode<synchronous>, transform_indices = @transform_1, window_bounds = array<i64: 768, 768>}, {pipeline_mode = #tpu.pipeline_mode<synchronous>, transform_indices = @transform_2, window_bounds = array<i64: 1, 768>}, {transform_indices = @transform_3, window_bounds = array<i64: 8, 768>}]} {
    %c0 = arith.constant 0 : index
    %c0_0 = arith.constant 0 : index
    %0 = vector.load %arg1[%c0, %c0_0] : memref<8x768xf32, #tpu.memory_space<vmem>>, vector<8x768xf32>
    %1 = arith.truncf %0 : vector<8x768xf32> to vector<8x768xbf16>
    %c0_1 = arith.constant 0 : index
    %c0_2 = arith.constant 0 : index
    %2 = vector.load %arg2[%c0_1, %c0_2] : memref<768x768xbf16, #tpu.memory_space<vmem>>, vector<768x768xbf16>
    %cst = arith.constant dense<0.000000e+00> : vector<8x768xf32>
    %3 = tpu.matmul %1, %2, %cst {dimension_numbers = #tpu.dot_dimension_numbers<[1], [0], [0], [1], [0, 0, 1, 1], [], []>} : vector<8x768xbf16>, vector<768x768xbf16>, vector<8x768xf32> -> vector<8x768xf32>
    %c0_3 = arith.constant 0 : index
    %c0_4 = arith.constant 0 : index
    %4 = vector.load %arg3[%c0_3, %c0_4] : memref<1x768xf32, #tpu.memory_space<vmem>>, vector<1x768xf32>
    %5 = vector.broadcast %4 : vector<1x768xf32> to vector<8x768xf32>
    %6 = arith.addf %3, %5 : vector<8x768xf32>
    %cst_5 = arith.constant 5.000000e-01 : f32
    %7 = vector.broadcast %cst_5 : f32 to vector<8x768xf32>
    %8 = arith.mulf %7, %6 : vector<8x768xf32>
    %cst_6 = arith.constant 0.707106769 : f32
    %9 = vector.broadcast %cst_6 : f32 to vector<8x768xf32>
    %10 = arith.mulf %6, %9 : vector<8x768xf32>
    %11 = math.erf %10 : vector<8x768xf32>
    %cst_7 = arith.constant 1.000000e+00 : f32
    %12 = vector.broadcast %cst_7 : f32 to vector<8x768xf32>
    %13 = arith.addf %12, %11 : vector<8x768xf32>
    %14 = arith.mulf %8, %13 : vector<8x768xf32>
    %c0_8 = arith.constant 0 : index
    %c0_9 = arith.constant 0 : index
    %15 = vector.load %arg4[%c0_8, %c0_9] : memref<8x768xf32, #tpu.memory_space<vmem>>, vector<8x768xf32>
    tpu.vector_store %arg4[%c0_8, %c0_9], %14 {strides = array<i32>} : memref<8x768xf32, #tpu.memory_space<vmem>>, vector<8x768xf32>,
    return
  }
  func.func @transform_0(%arg0: i32) -> (i32, i32) {
    %c0_i32 = arith.constant 0 : i32
    %c0_i32_0 = arith.constant 0 : i32
    return %arg0, %c0_i32 : i32, i32
  }
  func.func @transform_1(%arg0: i32) -> (i32, i32) {
    %c0_i32 = arith.constant 0 : i32
    %c0_i32_0 = arith.constant 0 : i32
    %c0_i32_1 = arith.constant 0 : i32
    return %c0_i32, %c0_i32_0 : i32, i32
  }
  func.func @transform_2(%arg0: i32) -> (i32, i32) {
    %c0_i32 = arith.constant 0 : i32
    %c0_i32_0 = arith.constant 0 : i32
    %c0_i32_1 = arith.constant 0 : i32
    return %c0_i32, %c0_i32_0 : i32, i32
  }
  func.func @transform_3(%arg0: i32) -> (i32, i32) {
    %c0_i32 = arith.constant 0 : i32
    %c0_i32_0 = arith.constant 0 : i32
    return %arg0, %c0_i32 : i32, i32
  }
}

</mosaic_0001>

<llo_original>
// kernel: mlp_forward.1
$region0: #{mlp_forward.1}
  #allocation0 [shape = 'u32[]', space=smem, size = 0x4, offset = 0x4, fixed_abs, tag = 'smem constant byte address 0x4 - core index']
  #allocation1 [shape = 'u32[144,128]{1,0:T(1,128)}', space=vmem, size = 0x12000, scoped, tag = 'internal scratch']
  %s0 = inlined_call_operand.hbm [shape: f32[16,768], index: 0, kind: input, shape index: {}]
  %s1 = inlined_call_operand.hbm [shape: bf16[768,768], index: 1, kind: input, shape index: {}]
  %s2 = inlined_call_operand.vmem [shape: f32[1,768], index: 2, kind: input, shape index: {}]
  %s3 = inlined_call_operand.hbm [shape: f32[16,768], index: 3, kind: output, shape index: {}]
  %s4 = sld [smem:[#allocation0]]
  $region53: #{mlp_forward.1} parent=0
    _
  %s6 = ssub.s32 1, %s4
  %s7 = scalar_select 0, %s6, %s4
  $region1: #{mlp_forward.1} parent=0
    #allocation2 [shape = 'u8[49152]{0}', space=vmem, size = 0xc000, scoped, tag = 'input window, operand 0']
    #allocation3 [shape = 's32[2]{0}', space=sflag, size = 0x8, scoped, tag = 'scoped memory for mlp_forward.1']
    #allocation4 [shape = 's32[2]{0}', space=sflag, size = 0x8, scoped, tag = 'scoped memory for mlp_forward.1']
    #allocation5 [shape = 'u8[1179648]{0}', space=vmem, size = 0x120000, scoped, tag = 'input window, operand 1, single buffered']
    #allocation6 [shape = 's32[1]{0}', space=sflag, size = 0x4, scoped, tag = 'scoped memory for mlp_forward.1']
    #allocation7 [shape = 'u8[49152]{0}', space=vmem, size = 0xc000, scoped, tag = 'output window, operand 0']
    %8 = vsyncpa [#allocation3], 0
    %s9 = scalar_lea.sflag [#allocation3], 1
    %10 = vsyncpa %s9, 0
    %11 = vsyncpa [#allocation6], 0
    %12 = vsyncpa [#allocation4], 0
    %s13 = scalar_lea.sflag [#allocation4], 1
    %14 = vsyncpa %s13, 0
    loop: start=0, step=1, limit=4
    $region2: #{mlp_forward.1} parent=1 // loop_pre_header
      _
    $region3: #{mlp_forward.1} parent=1 // loop_header
      %s16 = sphi 0, %s20
      %p17 = scmp.ge.s32.totalorder %s16, 4
      %s26 = sphi 0, %s28
      %s29 = sphi 0, %s26
      %s30 = sphi 0, %s29
      %s46 = sphi 0, %s30
      %s50 = sphi 0, %s50
      %s52 = sphi 0, %s50
      %s53 = sphi 0, %s52
      %s67 = sphi 0, %s53
      %s71 = sphi 0, %s71
      %s73 = sphi 0, %s71
      %s74 = sphi 0, %s73
      %s88 = sphi 0, %s74
      %s94 = sphi 0, %s96
      %s97 = sphi 0, %s94
      %s98 = sphi 0, %s97
      %s114 = sphi 0, %s98
    $region4: #{mlp_forward.1} parent=1 // loop_header_branch
      %19 = sbr.rel (%p17) target = $region8
    $region5: #{mlp_forward.1} parent=1 // loop_body
      %s21 = ssub.s32 %s16, 1
      %s22 = ssub.s32 %s16, 2
      %s23 = sadd.s32 %s16, 1
      %s24 = ssub.s32 %s16, %s23
      %p25 = scmp.eq.s32.totalorder %s24, 0
      %s27 = sadd.s32 %s26, 1
      %s28 = scalar_select %p25, %s26, %s27
      %p31 = pneg %p25
      %p32 = scmp.eq.s32.totalorder %s16, 1
      %p33 = por %p31, %p32
      %p34 = scmp.ne.s32.totalorder %s26, %s29
      %p35 = scmp.eq.s32.totalorder %s16, 0
      %p36 = por %p34, %p35
      %p37 = scmp.ne.s32.totalorder %s26, %s29
      %p38 = scmp.eq.s32.totalorder %s21, 1
      %p39 = por %p37, %p38
      %p40 = scmp.ne.s32.totalorder %s29, %s30
      %p41 = scmp.eq.s32.totalorder %s21, 0
      %p42 = por %p40, %p41
      %p43 = scmp.ne.s32.totalorder %s29, %s30
      %p44 = scmp.eq.s32.totalorder %s22, 1
      %p45 = por %p43, %p44
      %p47 = scmp.ne.s32.totalorder %s30, %s46
      %p48 = scmp.eq.s32.totalorder %s22, 0
      %p49 = por %p47, %p48
      %s51 = sadd.s32 %s50, 1
      %p54 = scmp.eq.s32.totalorder %s16, 1
      %p55 = scmp.ne.s32.totalorder %s50, %s52
      %p56 = scmp.eq.s32.totalorder %s16, 0
      %p57 = por %p55, %p56
      %p58 = scmp.ne.s32.totalorder %s50, %s52
      %p59 = scmp.eq.s32.totalorder %s21, 1
      %p60 = por %p58, %p59
      %p61 = scmp.ne.s32.totalorder %s52, %s53
      %p62 = scmp.eq.s32.totalorder %s21, 0
      %p63 = por %p61, %p62
      %p64 = scmp.ne.s32.totalorder %s52, %s53
      %p65 = scmp.eq.s32.totalorder %s22, 1
      %p66 = por %p64, %p65
      %p68 = scmp.ne.s32.totalorder %s53, %s67
      %p69 = scmp.eq.s32.totalorder %s22, 0
      %p70 = por %p68, %p69
      %s72 = sadd.s32 %s71, 1
      %p75 = scmp.eq.s32.totalorder %s16, 1
      %p76 = scmp.ne.s32.totalorder %s71, %s73
      %p77 = scmp.eq.s32.totalorder %s16, 0
      %p78 = por %p76, %p77
      %p79 = scmp.ne.s32.totalorder %s71, %s73
      %p80 = scmp.eq.s32.totalorder %s21, 1
      %p81 = por %p79, %p80
      %p82 = scmp.ne.s32.totalorder %s73, %s74
      %p83 = scmp.eq.s32.totalorder %s21, 0
      %p84 = por %p82, %p83
      %p85 = scmp.ne.s32.totalorder %s73, %s74
      %p86 = scmp.eq.s32.totalorder %s22, 1
      %p87 = por %p85, %p86
      %p89 = scmp.ne.s32.totalorder %s74, %s88
      %p90 = scmp.eq.s32.totalorder %s22, 0
      %p91 = por %p89, %p90
      %s92 = ssub.s32 %s16, %s23
      %p93 = scmp.eq.s32.totalorder %s92, 0
      %s95 = sadd.s32 %s94, 1
      %s96 = scalar_select %p93, %s94, %s95
      %p99 = pneg %p93
      %p100 = scmp.eq.s32.totalorder %s16, 1
      %p101 = por %p99, %p100
      %p102 = scmp.ne.s32.totalorder %s94, %s97
      %p103 = scmp.eq.s32.totalorder %s16, 0
      %p104 = por %p102, %p103
      %p105 = scmp.ne.s32.totalorder %s94, %s97
      %p106 = scmp.eq.s32.totalorder %s21, 1
      %p107 = por %p105, %p106
      %p108 = scmp.ne.s32.totalorder %s97, %s98
      %p109 = scmp.eq.s32.totalorder %s21, 0
      %p110 = por %p108, %p109
      %p111 = scmp.ne.s32.totalorder %s97, %s98
      %p112 = scmp.eq.s32.totalorder %s22, 1
      %p113 = por %p111, %p112
      %p115 = scmp.ne.s32.totalorder %s98, %s114
      %p116 = scmp.eq.s32.totalorder %s22, 0
      %p117 = por %p115, %p116
      %p118 = scmp.le.s32.totalorder 1, %s16
      %p119 = scmp.lt.s32.totalorder %s16, 3
      %p120 = pnand %p118, %p119
      %p121 = pneg %p120
      // Predicated region
      $region9: #{mlp_forward.1} parent=5 // pred_check
        _
      $region10: #{mlp_forward.1} parent=5 // pred_check_branch
        %123 = sbr.rel (%p120) target = $region12
      $region11: #{mlp_forward.1} parent=5 // pred_region
        %s124 = ssub.s32 %s16, 1
        // Predicated region
        $region13: #{mlp_forward.1} parent=11 // pred_check
          %p125 = pneg %p63
        $region14: #{mlp_forward.1} parent=11 // pred_check_branch
          %127 = sbr.rel (%p125) target = $region16
        $region15: #{mlp_forward.1} parent=11 // pred_region
          %s129 = ssub.s32 36864, 36864
          %130 = vsyncadd [#allocation6], %s129
          %s131 = sshll.u32 [#allocation5], 4
          %s132 = int_to_ptr.vmem [resolvable:$true] %s131
          %137 = dma.hbm_to_vmem [thread:$0]  %s1, 36864, %s132, [#allocation6], 384, 384, 24
        $region16: #{mlp_forward.1} parent=11 // pred_fallthru
          _
        // Predicated region
        $region17: #{mlp_forward.1} parent=11 // pred_check
          %p138 = pneg %p84
        $region18: #{mlp_forward.1} parent=11 // pred_check_branch
          %140 = sbr.rel (%p138) target = $region20
        $region19: #{mlp_forward.1} parent=11 // pred_region
          _
        $region20: #{mlp_forward.1} parent=11 // pred_fallthru
          _
      $region12: #{mlp_forward.1} parent=5 // pred_fallthru
        _
      %p141 = scmp.lt.s32.totalorder %s16, 2
      // Predicated region
      $region21: #{mlp_forward.1} parent=5 // pred_check
        %p142 = pneg %p141
      $region22: #{mlp_forward.1} parent=5 // pred_check_branch
        %144 = sbr.rel (%p142) target = $region24
      $region23: #{mlp_forward.1} parent=5 // pred_region
        // Predicated region
        $region25: #{mlp_forward.1} parent=23 // pred_check
          %p145 = pneg %p36
        $region26: #{mlp_forward.1} parent=23 // pred_check_branch
          %147 = sbr.rel (%p145) target = $region28
        $region27: #{mlp_forward.1} parent=23 // pred_region
          %s148 = sand.u32 %s26, 1
          %s149 = scalar_lea.sflag [#allocation3], %s148
          %s150 = sand.u32 %s26, 1
          %s151 = smul.addr %s150, 48
          %s152 = scalar_lea.vmem [#allocation2], %s151
          %s154 = ssub.s32 768, 768
          %155 = vsyncadd %s149, %s154
          %s156 = smul.addr %s16, 6
          %s157 = smul.addr %s156, 128
          %s158 = scalar_lea.hbm %s0, %s157
          %s160 = sshll.u32 %s152, 4
          %s161 = int_to_ptr.vmem [resolvable:$true] %s160
          %163 = dma.hbm_to_vmem [thread:$0]  %s158, 768, %s161, %s149
        $region28: #{mlp_forward.1} parent=23 // pred_fallthru
          _
      $region24: #{mlp_forward.1} parent=5 // pred_fallthru
        _
      %p164 = scmp.le.s32.totalorder 1, %s16
      %p165 = scmp.lt.s32.totalorder %s16, 3
      %p166 = pnand %p164, %p165
      %p167 = pneg %p166
      // Predicated region
      $region29: #{mlp_forward.1} parent=5 // pred_check
        _
      $region30: #{mlp_forward.1} parent=5 // pred_check_branch
        %169 = sbr.rel (%p166) target = $region32
      $region31: #{mlp_forward.1} parent=5 // pred_region
        %s170 = ssub.s32 %s16, 1
        %s171 = sand.u32 %s29, 1
        %s172 = scalar_lea.sflag [#allocation3], %s171
        %s173 = sand.u32 %s29, 1
        %s174 = smul.addr %s173, 48
        %s175 = scalar_lea.vmem [#allocation2], %s174
        // Predicated region
        $region33: #{mlp_forward.1} parent=31 // pred_check
          %p176 = pneg %p42
        $region34: #{mlp_forward.1} parent=31 // pred_check_branch
          %178 = sbr.rel (%p176) target = $region36
        $region35: #{mlp_forward.1} parent=31 // pred_region
          %179 = dma.done %s172, 768
        $region36: #{mlp_forward.1} parent=31 // pred_fallthru
          _
        // Predicated region
        $region37: #{mlp_forward.1} parent=31 // pred_check
          %p180 = pneg %p63
        $region38: #{mlp_forward.1} parent=31 // pred_check_branch
          %182 = sbr.rel (%p180) target = $region40
        $region39: #{mlp_forward.1} parent=31 // pred_region
          %183 = dma.done [#allocation6], 36864
        $region40: #{mlp_forward.1} parent=31 // pred_fallthru
          _
        %s184 = sand.u32 %s29, 1
        %s185 = scalar_lea.sflag [#allocation3], %s184
        %s186 = sand.u32 %s29, 1
        %s187 = smul.addr %s186, 48
        %s188 = scalar_lea.vmem [#allocation2], %s187
        %p189 = pneg %p42
        %p190 = pneg %p39
        %p191 = pneg %p63
        %p192 = pneg %p60
        %p193 = pneg %p84
        %p194 = pneg %p81
        %p195 = pneg %p110
        %p196 = pneg %p107
        %s197 = sand.u32 %s97, 1
        %s198 = scalar_lea.sflag [#allocation4], %s197
        %s199 = sand.u32 %s97, 1
        %s200 = smul.addr %s199, 48
        %s201 = scalar_lea.vmem [#allocation7], %s200
        %v202 = vld [vmem:[%s175] sm:$0xff]
        %v203 = vld [vmem:[%s175 + $0x8] sm:$0xff]
        %v204 = vld [vmem:[%s175 + $0x10] sm:$0xff]
        %v205 = vld [vmem:[%s175 + $0x18] sm:$0xff]
        %v206 = vld [vmem:[%s175 + $0x20] sm:$0xff]
        %v207 = vld [vmem:[%s175 + $0x28] sm:$0xff]
        %v208 = vpack.c.bf16 %v202, %v202
        %v209 = vpack.c.bf16 %v203, %v203
        %v210 = vpack.c.bf16 %v204, %v204
        %v211 = vpack.c.bf16 %v205, %v205
        %v212 = vpack.c.bf16 %v206, %v206
        %v213 = vpack.c.bf16 %v207, %v207
        %v214 = vld [vmem:[#allocation5] sm:$0xff]
        %v215 = vld [vmem:[#allocation5 + $0x8] sm:$0xff]
        %v216 = vld [vmem:[#allocation5 + $0x10] sm:$0xff]
        %v217 = vld [vmem:[#allocation5 + $0x18] sm:$0xff]
        %v218 = vld [vmem:[#allocation5 + $0x20] sm:$0xff]
        %v219 = vld [vmem:[#allocation5 + $0x28] sm:$0xff]
        %v220 = vld [vmem:[#allocation5 + $0x30] sm:$0xff]
        %v221 = vld [vmem:[#allocation5 + $0x38] sm:$0xff]
        %v222 = vld [vmem:[#allocation5 + $0x40] sm:$0xff]
        %v223 = vld [vmem:[#allocation5 + $0x48] sm:$0xff]
        %v224 = vld [vmem:[#allocation5 + $0x50] sm:$0xff]
        %v225 = vld [vmem:[#allocation5 + $0x58] sm:$0xff]
        %v226 = vld [vmem:[#allocation5 + $0x60] sm:$0xff]
        %v227 = vld [vmem:[#allocation5 + $0x68] sm:$0xff]
        %v228 = vld [vmem:[#allocation5 + $0x70] sm:$0xff]
        %v229 = vld [vmem:[#allocation5 + $0x78] sm:$0xff]
        %v230 = vld [vmem:[#allocation5 + $0x80] sm:$0xff]
        %v231 = vld [vmem:[#allocation5 + $0x88] sm:$0xff]
        %v232 = vld [vmem:[#allocation5 + $0x90] sm:$0xff]
        %v233 = vld [vmem:[#allocation5 + $0x98] sm:$0xff]
        %v234 = vld [vmem:[#allocation5 + $0xa0] sm:$0xff]
        %v235 = vld [vmem:[#allocation5 + $0xa8] sm:$0xff]
        %v236 = vld [vmem:[#allocation5 + $0xb0] sm:$0xff]
        %v237 = vld [vmem:[#allocation5 + $0xb8] sm:$0xff]
        %v238 = vld [vmem:[#allocation5 + $0xc0] sm:$0xff]
        %v239 = vld [vmem:[#allocation5 + $0xc8] sm:$0xff]
        %v240 = vld [vmem:[#allocation5 + $0xd0] sm:$0xff]
        %v241 = vld [vmem:[#allocation5 + $0xd8] sm:$0xff]
        %v242 = vld [vmem:[#allocation5 + $0xe0] sm:$0xff]
        %v243 = vld [vmem:[#allocation5 + $0xe8] sm:$0xff]
        %v244 = vld [vmem:[#allocation5 + $0xf0] sm:$0xff]
        %v245 = vld [vmem:[#allocation5 + $0xf8] sm:$0xff]
        %v246 = vld [vmem:[#allocation5 + $0x100] sm:$0xff]
        %v247 = vld [vmem:[#allocation5 + $0x108] sm:$0xff]
        %v248 = vld [vmem:[#allocation5 + $0x110] sm:$0xff]
        %v249 = vld [vmem:[#allocation5 + $0x118] sm:$0xff]
        %v250 = vld [vmem:[#allocation5 + $0x120] sm:$0xff]
        %v251 = vld [vmem:[#allocation5 + $0x128] sm:$0xff]
        %v252 = vld [vmem:[#allocation5 + $0x130] sm:$0xff]
        %v253 = vld [vmem:[#allocation5 + $0x138] sm:$0xff]
        %v254 = vld [vmem:[#allocation5 + $0x140] sm:$0xff]
        %v255 = vld [vmem:[#allocation5 + $0x148] sm:$0xff]
        %v256 = vld [vmem:[#allocation5 + $0x150] sm:$0xff]
        %v257 = vld [vmem:[#allocation5 + $0x158] sm:$0xff]
        %v258 = vld [vmem:[#allocation5 + $0x160] sm:$0xff]
        %v259 = vld [vmem:[#allocation5 + $0x168] sm:$0xff]
        %v260 = vld [vmem:[#allocation5 + $0x170] sm:$0xff]
        %v261 = vld [vmem:[#allocation5 + $0x178] sm:$0xff]
        %v262 = vld [vmem:[#allocation5 + $0x180] sm:$0xff]
        %v263 = vld [vmem:[#allocation5 + $0x188] sm:$0xff]
        %v264 = vld [vmem:[#allocation5 + $0x190] sm:$0xff]
        %v265 = vld [vmem:[#allocation5 + $0x198] sm:$0xff]
        %v266 = vld [vmem:[#allocation5 + $0x1a0] sm:$0xff]
        %v267 = vld [vmem:[#allocation5 + $0x1a8] sm:$0xff]
        %v268 = vld [vmem:[#allocation5 + $0x1b0] sm:$0xff]
        %v269 = vld [vmem:[#allocation5 + $0x1b8] sm:$0xff]
        %v270 = vld [vmem:[#allocation5 + $0x1c0] sm:$0xff]
        %v271 = vld [vmem:[#allocation5 + $0x1c8] sm:$0xff]
        %v272 = vld [vmem:[#allocation5 + $0x1d0] sm:$0xff]
        %v273 = vld [vmem:[#allocation5 + $0x1d8] sm:$0xff]
        %v274 = vld [vmem:[#allocation5 + $0x1e0] sm:$0xff]
        %v275 = vld [vmem:[#allocation5 + $0x1e8] sm:$0xff]
        %v276 = vld [vmem:[#allocation5 + $0x1f0] sm:$0xff]
        %v277 = vld [vmem:[#allocation5 + $0x1f8] sm:$0xff]
        %v278 = vld [vmem:[#allocation5 + $0x200] sm:$0xff]
        %v279 = vld [vmem:[#allocation5 + $0x208] sm:$0xff]
        %v280 = vld [vmem:[#allocation5 + $0x210] sm:$0xff]
        %v281 = vld [vmem:[#allocation5 + $0x218] sm:$0xff]
        %v282 = vld [vmem:[#allocation5 + $0x220] sm:$0xff]
        %v283 = vld [vmem:[#allocation5 + $0x228] sm:$0xff]
        %v284 = vld [vmem:[#allocation5 + $0x230] sm:$0xff]
        %v285 = vld [vmem:[#allocation5 + $0x238] sm:$0xff]
        %v286 = vld [vmem:[#allocation5 + $0x240] sm:$0xff]
        %v287 = vld [vmem:[#allocation5 + $0x248] sm:$0xff]
        %v288 = vld [vmem:[#allocation5 + $0x250] sm:$0xff]
        %v289 = vld [vmem:[#allocation5 + $0x258] sm:$0xff]
        %v290 = vld [vmem:[#allocation5 + $0x260] sm:$0xff]
        %v291 = vld [vmem:[#allocation5 + $0x268] sm:$0xff]
        %v292 = vld [vmem:[#allocation5 + $0x270] sm:$0xff]
        %v293 = vld [vmem:[#allocation5 + $0x278] sm:$0xff]
        %v294 = vld [vmem:[#allocation5 + $0x280] sm:$0xff]
        %v295 = vld [vmem:[#allocation5 + $0x288] sm:$0xff]
        %v296 = vld [vmem:[#allocation5 + $0x290] sm:$0xff]
        %v297 = vld [vmem:[#allocation5 + $0x298] sm:$0xff]
        %v298 = vld [vmem:[#allocation5 + $0x2a0] sm:$0xff]
        %v299 = vld [vmem:[#allocation5 + $0x2a8] sm:$0xff]
        %v300 = vld [vmem:[#allocation5 + $0x2b0] sm:$0xff]
        %v301 = vld [vmem:[#allocation5 + $0x2b8] sm:$0xff]
        %v302 = vld [vmem:[#allocation5 + $0x2c0] sm:$0xff]
        %v303 = vld [vmem:[#allocation5 + $0x2c8] sm:$0xff]
        %v304 = vld [vmem:[#allocation5 + $0x2d0] sm:$0xff]
        %v305 = vld [vmem:[#allocation5 + $0x2d8] sm:$0xff]
        %v306 = vld [vmem:[#allocation5 + $0x2e0] sm:$0xff]
        %v307 = vld [vmem:[#allocation5 + $0x2e8] sm:$0xff]
        %v308 = vld [vmem:[#allocation5 + $0x2f0] sm:$0xff]
        %v309 = vld [vmem:[#allocation5 + $0x2f8] sm:$0xff]
        %v310 = vld [vmem:[#allocation5 + $0x300] sm:$0xff]
        %v311 = vld [vmem:[#allocation5 + $0x308] sm:$0xff]
        %v312 = vld [vmem:[#allocation5 + $0x310] sm:$0xff]
        %v313 = vld [vmem:[#allocation5 + $0x318] sm:$0xff]
        %v314 = vld [vmem:[#allocation5 + $0x320] sm:$0xff]
        %v315 = vld [vmem:[#allocation5 + $0x328] sm:$0xff]
        %v316 = vld [vmem:[#allocation5 + $0x330] sm:$0xff]
        %v317 = vld [vmem:[#allocation5 + $0x338] sm:$0xff]
        %v318 = vld [vmem:[#allocation5 + $0x340] sm:$0xff]
        %v319 = vld [vmem:[#allocation5 + $0x348] sm:$0xff]
        %v320 = vld [vmem:[#allocation5 + $0x350] sm:$0xff]
        %v321 = vld [vmem:[#allocation5 + $0x358] sm:$0xff]
        %v322 = vld [vmem:[#allocation5 + $0x360] sm:$0xff]
        %v323 = vld [vmem:[#allocation5 + $0x368] sm:$0xff]
        %v324 = vld [vmem:[#allocation5 + $0x370] sm:$0xff]
        %v325 = vld [vmem:[#allocation5 + $0x378] sm:$0xff]
        %v326 = vld [vmem:[#allocation5 + $0x380] sm:$0xff]
        %v327 = vld [vmem:[#allocation5 + $0x388] sm:$0xff]
        %v328 = vld [vmem:[#allocation5 + $0x390] sm:$0xff]
        %v329 = vld [vmem:[#allocation5 + $0x398] sm:$0xff]
        %v330 = vld [vmem:[#allocation5 + $0x3a0] sm:$0xff]
        %v331 = vld [vmem:[#allocation5 + $0x3a8] sm:$0xff]
        %v332 = vld [vmem:[#allocation5 + $0x3b0] sm:$0xff]
        %v333 = vld [vmem:[#allocation5 + $0x3b8] sm:$0xff]
        %v334 = vld [vmem:[#allocation5 + $0x3c0] sm:$0xff]
        %v335 = vld [vmem:[#allocation5 + $0x3c8] sm:$0xff]
        %v336 = vld [vmem:[#allocation5 + $0x3d0] sm:$0xff]
        %v337 = vld [vmem:[#allocation5 + $0x3d8] sm:$0xff]
        %v338 = vld [vmem:[#allocation5 + $0x3e0] sm:$0xff]
        %v339 = vld [vmem:[#allocation5 + $0x3e8] sm:$0xff]
        %v340 = vld [vmem:[#allocation5 + $0x3f0] sm:$0xff]
        %v341 = vld [vmem:[#allocation5 + $0x3f8] sm:$0xff]
        %v342 = vld [vmem:[#allocation5 + $0x400] sm:$0xff]
        %v343 = vld [vmem:[#allocation5 + $0x408] sm:$0xff]
        %v344 = vld [vmem:[#allocation5 + $0x410] sm:$0xff]
        %v345 = vld [vmem:[#allocation5 + $0x418] sm:$0xff]
        %v346 = vld [vmem:[#allocation5 + $0x420] sm:$0xff]
        %v347 = vld [vmem:[#allocation5 + $0x428] sm:$0xff]
        %v348 = vld [vmem:[#allocation5 + $0x430] sm:$0xff]
        %v349 = vld [vmem:[#allocation5 + $0x438] sm:$0xff]
        %v350 = vld [vmem:[#allocation5 + $0x440] sm:$0xff]
        %v351 = vld [vmem:[#allocation5 + $0x448] sm:$0xff]
        %v352 = vld [vmem:[#allocation5 + $0x450] sm:$0xff]
        %v353 = vld [vmem:[#allocation5 + $0x458] sm:$0xff]
        %v354 = vld [vmem:[#allocation5 + $0x460] sm:$0xff]
        %v355 = vld [vmem:[#allocation5 + $0x468] sm:$0xff]
        %v356 = vld [vmem:[#allocation5 + $0x470] sm:$0xff]
        %v357 = vld [vmem:[#allocation5 + $0x478] sm:$0xff]
        %v358 = vld [vmem:[#allocation5 + $0x480] sm:$0xff]
        %v359 = vld [vmem:[#allocation5 + $0x488] sm:$0xff]
        %v360 = vld [vmem:[#allocation5 + $0x490] sm:$0xff]
        %v361 = vld [vmem:[#allocation5 + $0x498] sm:$0xff]
        %v362 = vld [vmem:[#allocation5 + $0x4a0] sm:$0xff]
        %v363 = vld [vmem:[#allocation5 + $0x4a8] sm:$0xff]
        %v364 = vld [vmem:[#allocation5 + $0x4b0] sm:$0xff]
        %v365 = vld [vmem:[#allocation5 + $0x4b8] sm:$0xff]
        %v366 = vld [vmem:[#allocation5 + $0x4c0] sm:$0xff]
        %v367 = vld [vmem:[#allocation5 + $0x4c8] sm:$0xff]
        %v368 = vld [vmem:[#allocation5 + $0x4d0] sm:$0xff]
        %v369 = vld [vmem:[#allocation5 + $0x4d8] sm:$0xff]
        %v370 = vld [vmem:[#allocation5 + $0x4e0] sm:$0xff]
        %v371 = vld [vmem:[#allocation5 + $0x4e8] sm:$0xff]
        %v372 = vld [vmem:[#allocation5 + $0x4f0] sm:$0xff]
        %v373 = vld [vmem:[#allocation5 + $0x4f8] sm:$0xff]
        %v374 = vld [vmem:[#allocation5 + $0x500] sm:$0xff]
        %v375 = vld [vmem:[#allocation5 + $0x508] sm:$0xff]
        %v376 = vld [vmem:[#allocation5 + $0x510] sm:$0xff]
        %v377 = vld [vmem:[#allocation5 + $0x518] sm:$0xff]
        %v378 = vld [vmem:[#allocation5 + $0x520] sm:$0xff]
        %v379 = vld [vmem:[#allocation5 + $0x528] sm:$0xff]
        %v380 = vld [vmem:[#allocation5 + $0x530] sm:$0xff]
        %v381 = vld [vmem:[#allocation5 + $0x538] sm:$0xff]
        %v382 = vld [vmem:[#allocation5 + $0x540] sm:$0xff]
        %v383 = vld [vmem:[#allocation5 + $0x548] sm:$0xff]
        %v384 = vld [vmem:[#allocation5 + $0x550] sm:$0xff]
        %v385 = vld [vmem:[#allocation5 + $0x558] sm:$0xff]
        %v386 = vld [vmem:[#allocation5 + $0x560] sm:$0xff]
        %v387 = vld [vmem:[#allocation5 + $0x568] sm:$0xff]
        %v388 = vld [vmem:[#allocation5 + $0x570] sm:$0xff]
        %v389 = vld [vmem:[#allocation5 + $0x578] sm:$0xff]
        %v390 = vld [vmem:[#allocation5 + $0x580] sm:$0xff]
        %v391 = vld [vmem:[#allocation5 + $0x588] sm:$0xff]
        %v392 = vld [vmem:[#allocation5 + $0x590] sm:$0xff]
        %v393 = vld [vmem:[#allocation5 + $0x598] sm:$0xff]
        %v394 = vld [vmem:[#allocation5 + $0x5a0] sm:$0xff]
        %v395 = vld [vmem:[#allocation5 + $0x5a8] sm:$0xff]
        %v396 = vld [vmem:[#allocation5 + $0x5b0] sm:$0xff]
        %v397 = vld [vmem:[#allocation5 + $0x5b8] sm:$0xff]
        %v398 = vld [vmem:[#allocation5 + $0x5c0] sm:$0xff]
        %v399 = vld [vmem:[#allocation5 + $0x5c8] sm:$0xff]
        %v400 = vld [vmem:[#allocation5 + $0x5d0] sm:$0xff]
        %v401 = vld [vmem:[#allocation5 + $0x5d8] sm:$0xff]
        %v402 = vld [vmem:[#allocation5 + $0x5e0] sm:$0xff]
        %v403 = vld [vmem:[#allocation5 + $0x5e8] sm:$0xff]
        %v404 = vld [vmem:[#allocation5 + $0x5f0] sm:$0xff]
        %v405 = vld [vmem:[#allocation5 + $0x5f8] sm:$0xff]
        %v406 = vld [vmem:[#allocation5 + $0x600] sm:$0xff]
        %v407 = vld [vmem:[#allocation5 + $0x608] sm:$0xff]
        %v408 = vld [vmem:[#allocation5 + $0x610] sm:$0xff]
        %v409 = vld [vmem:[#allocation5 + $0x618] sm:$0xff]
        %v410 = vld [vmem:[#allocation5 + $0x620] sm:$0xff]
        %v411 = vld [vmem:[#allocation5 + $0x628] sm:$0xff]
        %v412 = vld [vmem:[#allocation5 + $0x630] sm:$0xff]
        %v413 = vld [vmem:[#allocation5 + $0x638] sm:$0xff]
        %v414 = vld [vmem:[#allocation5 + $0x640] sm:$0xff]
        %v415 = vld [vmem:[#allocation5 + $0x648] sm:$0xff]
        %v416 = vld [vmem:[#allocation5 + $0x650] sm:$0xff]
        %v417 = vld [vmem:[#allocation5 + $0x658] sm:$0xff]
        %v418 = vld [vmem:[#allocation5 + $0x660] sm:$0xff]
        %v419 = vld [vmem:[#allocation5 + $0x668] sm:$0xff]
        %v420 = vld [vmem:[#allocation5 + $0x670] sm:$0xff]
        %v421 = vld [vmem:[#allocation5 + $0x678] sm:$0xff]
        %v422 = vld [vmem:[#allocation5 + $0x680] sm:$0xff]
        %v423 = vld [vmem:[#allocation5 + $0x688] sm:$0xff]
        %v424 = vld [vmem:[#allocation5 + $0x690] sm:$0xff]
        %v425 = vld [vmem:[#allocation5 + $0x698] sm:$0xff]
        %v426 = vld [vmem:[#allocation5 + $0x6a0] sm:$0xff]
        %v427 = vld [vmem:[#allocation5 + $0x6a8] sm:$0xff]
        %v428 = vld [vmem:[#allocation5 + $0x6b0] sm:$0xff]
        %v429 = vld [vmem:[#allocation5 + $0x6b8] sm:$0xff]
        %v430 = vld [vmem:[#allocation5 + $0x6c0] sm:$0xff]
        %v431 = vld [vmem:[#allocation5 + $0x6c8] sm:$0xff]
        %v432 = vld [vmem:[#allocation5 + $0x6d0] sm:$0xff]
        %v433 = vld [vmem:[#allocation5 + $0x6d8] sm:$0xff]
        %v434 = vld [vmem:[#allocation5 + $0x6e0] sm:$0xff]
        %v435 = vld [vmem:[#allocation5 + $0x6e8] sm:$0xff]
        %v436 = vld [vmem:[#allocation5 + $0x6f0] sm:$0xff]
        %v437 = vld [vmem:[#allocation5 + $0x6f8] sm:$0xff]
        %v438 = vld [vmem:[#allocation5 + $0x700] sm:$0xff]
        %v439 = vld [vmem:[#allocation5 + $0x708] sm:$0xff]
        %v440 = vld [vmem:[#allocation5 + $0x710] sm:$0xff]
        %v441 = vld [vmem:[#allocation5 + $0x718] sm:$0xff]
        %v442 = vld [vmem:[#allocation5 + $0x720] sm:$0xff]
        %v443 = vld [vmem:[#allocation5 + $0x728] sm:$0xff]
        %v444 = vld [vmem:[#allocation5 + $0x730] sm:$0xff]
        %v445 = vld [vmem:[#allocation5 + $0x738] sm:$0xff]
        %v446 = vld [vmem:[#allocation5 + $0x740] sm:$0xff]
        %v447 = vld [vmem:[#allocation5 + $0x748] sm:$0xff]
        %v448 = vld [vmem:[#allocation5 + $0x750] sm:$0xff]
        %v449 = vld [vmem:[#allocation5 + $0x758] sm:$0xff]
        %v450 = vld [vmem:[#allocation5 + $0x760] sm:$0xff]
        %v451 = vld [vmem:[#allocation5 + $0x768] sm:$0xff]
        %v452 = vld [vmem:[#allocation5 + $0x770] sm:$0xff]
        %v453 = vld [vmem:[#allocation5 + $0x778] sm:$0xff]
        %v454 = vld [vmem:[#allocation5 + $0x780] sm:$0xff]
        %v455 = vld [vmem:[#allocation5 + $0x788] sm:$0xff]
        %v456 = vld [vmem:[#allocation5 + $0x790] sm:$0xff]
        %v457 = vld [vmem:[#allocation5 + $0x798] sm:$0xff]
        %v458 = vld [vmem:[#allocation5 + $0x7a0] sm:$0xff]
        %v459 = vld [vmem:[#allocation5 + $0x7a8] sm:$0xff]
        %v460 = vld [vmem:[#allocation5 + $0x7b0] sm:$0xff]
        %v461 = vld [vmem:[#allocation5 + $0x7b8] sm:$0xff]
        %v462 = vld [vmem:[#allocation5 + $0x7c0] sm:$0xff]
        %v463 = vld [vmem:[#allocation5 + $0x7c8] sm:$0xff]
        %v464 = vld [vmem:[#allocation5 + $0x7d0] sm:$0xff]
        %v465 = vld [vmem:[#allocation5 + $0x7d8] sm:$0xff]
        %v466 = vld [vmem:[#allocation5 + $0x7e0] sm:$0xff]
        %v467 = vld [vmem:[#allocation5 + $0x7e8] sm:$0xff]
        %v468 = vld [vmem:[#allocation5 + $0x7f0] sm:$0xff]
        %v469 = vld [vmem:[#allocation5 + $0x7f8] sm:$0xff]
        %v470 = vld [vmem:[#allocation5 + $0x800] sm:$0xff]
        %v471 = vld [vmem:[#allocation5 + $0x808] sm:$0xff]
        %v472 = vld [vmem:[#allocation5 + $0x810] sm:$0xff]
        %v473 = vld [vmem:[#allocation5 + $0x818] sm:$0xff]
        %v474 = vld [vmem:[#allocation5 + $0x820] sm:$0xff]
        %v475 = vld [vmem:[#allocation5 + $0x828] sm:$0xff]
        %v476 = vld [vmem:[#allocation5 + $0x830] sm:$0xff]
        %v477 = vld [vmem:[#allocation5 + $0x838] sm:$0xff]
        %v478 = vld [vmem:[#allocation5 + $0x840] sm:$0xff]
        %v479 = vld [vmem:[#allocation5 + $0x848] sm:$0xff]
        %v480 = vld [vmem:[#allocation5 + $0x850] sm:$0xff]
        %v481 = vld [vmem:[#allocation5 + $0x858] sm:$0xff]
        %v482 = vld [vmem:[#allocation5 + $0x860] sm:$0xff]
        %v483 = vld [vmem:[#allocation5 + $0x868] sm:$0xff]
        %v484 = vld [vmem:[#allocation5 + $0x870] sm:$0xff]
        %v485 = vld [vmem:[#allocation5 + $0x878] sm:$0xff]
        %v486 = vld [vmem:[#allocation5 + $0x880] sm:$0xff]
        %v487 = vld [vmem:[#allocation5 + $0x888] sm:$0xff]
        %v488 = vld [vmem:[#allocation5 + $0x890] sm:$0xff]
        %v489 = vld [vmem:[#allocation5 + $0x898] sm:$0xff]
        %v490 = vld [vmem:[#allocation5 + $0x8a0] sm:$0xff]
        %v491 = vld [vmem:[#allocation5 + $0x8a8] sm:$0xff]
        %v492 = vld [vmem:[#allocation5 + $0x8b0] sm:$0xff]
        %v493 = vld [vmem:[#allocation5 + $0x8b8] sm:$0xff]
        %v494 = vld [vmem:[#allocation5 + $0x8c0] sm:$0xff]
        %v495 = vld [vmem:[#allocation5 + $0x8c8] sm:$0xff]
        %v496 = vld [vmem:[#allocation5 + $0x8d0] sm:$0xff]
        %v497 = vld [vmem:[#allocation5 + $0x8d8] sm:$0xff]
        %v498 = vld [vmem:[#allocation5 + $0x8e0] sm:$0xff]
        %v499 = vld [vmem:[#allocation5 + $0x8e8] sm:$0xff]
        %v500 = vld [vmem:[#allocation5 + $0x8f0] sm:$0xff]
        %v501 = vld [vmem:[#allocation5 + $0x8f8] sm:$0xff]
        %v502 = vld [vmem:[%s2] sm:$0x3f]
        %v504 = vlaneseq
        %v505 = vshrl.u32 %v504, 7
        %v506 = vsub.s32 0, %v505
        %v507 = vrot.slane %v502, %v506
        %v508 = vlaneseq
        %v509 = vshrl.u32 %v508, 7
        %v510 = vsub.s32 1, %v509
        %v511 = vrot.slane %v502, %v510
        %v512 = vlaneseq
        %v513 = vshrl.u32 %v512, 7
        %v514 = vsub.s32 2, %v513
        %v515 = vrot.slane %v502, %v514
        %v516 = vlaneseq
        %v517 = vshrl.u32 %v516, 7
        %v518 = vsub.s32 3, %v517
        %v519 = vrot.slane %v502, %v518
        %v520 = vlaneseq
        %v521 = vshrl.u32 %v520, 7
        %v522 = vsub.s32 4, %v521
        %v523 = vrot.slane %v502, %v522
        %v524 = vlaneseq
        %v525 = vshrl.u32 %v524, 7
        %v526 = vsub.s32 5, %v525
        %v527 = vrot.slane %v502, %v526
        %v822 = vunpack.c.l.b16 %v214
        %v823 = vunpack.c.h.b16 %v214
        %v824 = vunpack.c.l.b16 %v215
        %v825 = vunpack.c.h.b16 %v215
        %v826 = vunpack.c.l.b16 %v216
        %v827 = vunpack.c.h.b16 %v216
        %v828 = vunpack.c.l.b16 %v217
        %v829 = vunpack.c.h.b16 %v217
        %v830 = vunpack.c.l.b16 %v218
        %v831 = vunpack.c.h.b16 %v218
        %v832 = vunpack.c.l.b16 %v219
        %v833 = vunpack.c.h.b16 %v219
        %v834 = vunpack.c.l.b16 %v220
        %v835 = vunpack.c.h.b16 %v220
        %v836 = vunpack.c.l.b16 %v221
        %v837 = vunpack.c.h.b16 %v221
        %v838 = vunpack.c.l.b16 %v222
        %v839 = vunpack.c.h.b16 %v222
        %v840 = vunpack.c.l.b16 %v223
        %v841 = vunpack.c.h.b16 %v223
        %v842 = vunpack.c.l.b16 %v224
        %v843 = vunpack.c.h.b16 %v224
        %v844 = vunpack.c.l.b16 %v225
        %v845 = vunpack.c.h.b16 %v225
        %v846 = vunpack.c.l.b16 %v226
        %v847 = vunpack.c.h.b16 %v226
        %v848 = vunpack.c.l.b16 %v227
        %v849 = vunpack.c.h.b16 %v227
        %v850 = vunpack.c.l.b16 %v228
        %v851 = vunpack.c.h.b16 %v228
        %v852 = vunpack.c.l.b16 %v229
        %v853 = vunpack.c.h.b16 %v229
        %v854 = vunpack.c.l.b16 %v230
        %v855 = vunpack.c.h.b16 %v230
        %v856 = vunpack.c.l.b16 %v231
        %v857 = vunpack.c.h.b16 %v231
        %v858 = vunpack.c.l.b16 %v232
        %v859 = vunpack.c.h.b16 %v232
        %v860 = vunpack.c.l.b16 %v233
        %v861 = vunpack.c.h.b16 %v233
        %v862 = vunpack.c.l.b16 %v234
        %v863 = vunpack.c.h.b16 %v234
        %v864 = vunpack.c.l.b16 %v235
        %v865 = vunpack.c.h.b16 %v235
        %v866 = vunpack.c.l.b16 %v236
        %v867 = vunpack.c.h.b16 %v236
        %v868 = vunpack.c.l.b16 %v237
        %v869 = vunpack.c.h.b16 %v237
        %v870 = vunpack.c.l.b16 %v238
        %v871 = vunpack.c.h.b16 %v238
        %v872 = vunpack.c.l.b16 %v239
        %v873 = vunpack.c.h.b16 %v239
        %v874 = vunpack.c.l.b16 %v240
        %v875 = vunpack.c.h.b16 %v240
        %v876 = vunpack.c.l.b16 %v241
        %v877 = vunpack.c.h.b16 %v241
        %v878 = vunpack.c.l.b16 %v242
        %v879 = vunpack.c.h.b16 %v242
        %v880 = vunpack.c.l.b16 %v243
        %v881 = vunpack.c.h.b16 %v243
        %v882 = vunpack.c.l.b16 %v244
        %v883 = vunpack.c.h.b16 %v244
        %v884 = vunpack.c.l.b16 %v245
        %v885 = vunpack.c.h.b16 %v245
        %v886 = vunpack.c.l.b16 %v246
        %v887 = vunpack.c.h.b16 %v246
        %v888 = vunpack.c.l.b16 %v247
        %v889 = vunpack.c.h.b16 %v247
        %v890 = vunpack.c.l.b16 %v248
        %v891 = vunpack.c.h.b16 %v248
        %v892 = vunpack.c.l.b16 %v249
        %v893 = vunpack.c.h.b16 %v249
        %v894 = vunpack.c.l.b16 %v250
        %v895 = vunpack.c.h.b16 %v250
        %v896 = vunpack.c.l.b16 %v251
        %v897 = vunpack.c.h.b16 %v251
        %v898 = vunpack.c.l.b16 %v252
        %v899 = vunpack.c.h.b16 %v252
        %v900 = vunpack.c.l.b16 %v253
        %v901 = vunpack.c.h.b16 %v253
        %v902 = vunpack.c.l.b16 %v254
        %v903 = vunpack.c.h.b16 %v254
        %v904 = vunpack.c.l.b16 %v255
        %v905 = vunpack.c.h.b16 %v255
        %v906 = vunpack.c.l.b16 %v256
        %v907 = vunpack.c.h.b16 %v256
        %v908 = vunpack.c.l.b16 %v257
        %v909 = vunpack.c.h.b16 %v257
        %v910 = vunpack.c.l.b16 %v258
        %v911 = vunpack.c.h.b16 %v258
        %v912 = vunpack.c.l.b16 %v259
        %v913 = vunpack.c.h.b16 %v259
        %v914 = vunpack.c.l.b16 %v260
        %v915 = vunpack.c.h.b16 %v260
        %v916 = vunpack.c.l.b16 %v261
        %v917 = vunpack.c.h.b16 %v261
        %v918 = vunpack.c.l.b16 %v262
        %v919 = vunpack.c.h.b16 %v262
        %v920 = vunpack.c.l.b16 %v263
        %v921 = vunpack.c.h.b16 %v263
        %v922 = vunpack.c.l.b16 %v264
        %v923 = vunpack.c.h.b16 %v264
        %v924 = vunpack.c.l.b16 %v265
        %v925 = vunpack.c.h.b16 %v265
        %v926 = vunpack.c.l.b16 %v266
        %v927 = vunpack.c.h.b16 %v266
        %v928 = vunpack.c.l.b16 %v267
        %v929 = vunpack.c.h.b16 %v267
        %v930 = vunpack.c.l.b16 %v268
        %v931 = vunpack.c.h.b16 %v268
        %v932 = vunpack.c.l.b16 %v269
        %v933 = vunpack.c.h.b16 %v269
        %v934 = vunpack.c.l.b16 %v270
        %v935 = vunpack.c.h.b16 %v270
        %v936 = vunpack.c.l.b16 %v271
        %v937 = vunpack.c.h.b16 %v271
        %v938 = vunpack.c.l.b16 %v272
        %v939 = vunpack.c.h.b16 %v272
        %v940 = vunpack.c.l.b16 %v273
        %v941 = vunpack.c.h.b16 %v273
        %v942 = vunpack.c.l.b16 %v274
        %v943 = vunpack.c.h.b16 %v274
        %v944 = vunpack.c.l.b16 %v275
        %v945 = vunpack.c.h.b16 %v275
        %v946 = vunpack.c.l.b16 %v276
        %v947 = vunpack.c.h.b16 %v276
        %v948 = vunpack.c.l.b16 %v277
        %v949 = vunpack.c.h.b16 %v277
        %v950 = vunpack.c.l.b16 %v278
        %v951 = vunpack.c.h.b16 %v278
        %v952 = vunpack.c.l.b16 %v279
        %v953 = vunpack.c.h.b16 %v279
        %v954 = vunpack.c.l.b16 %v280
        %v955 = vunpack.c.h.b16 %v280
        %v956 = vunpack.c.l.b16 %v281
        %v957 = vunpack.c.h.b16 %v281
        %v958 = vunpack.c.l.b16 %v282
        %v959 = vunpack.c.h.b16 %v282
        %v960 = vunpack.c.l.b16 %v283
        %v961 = vunpack.c.h.b16 %v283
        %v962 = vunpack.c.l.b16 %v284
        %v963 = vunpack.c.h.b16 %v284
        %v964 = vunpack.c.l.b16 %v285
        %v965 = vunpack.c.h.b16 %v285
        %v966 = vunpack.c.l.b16 %v286
        %v967 = vunpack.c.h.b16 %v286
        %v968 = vunpack.c.l.b16 %v287
        %v969 = vunpack.c.h.b16 %v287
        %v970 = vunpack.c.l.b16 %v288
        %v971 = vunpack.c.h.b16 %v288
        %v972 = vunpack.c.l.b16 %v289
        %v973 = vunpack.c.h.b16 %v289
        %v974 = vunpack.c.l.b16 %v290
        %v975 = vunpack.c.h.b16 %v290
        %v976 = vunpack.c.l.b16 %v291
        %v977 = vunpack.c.h.b16 %v291
        %v978 = vunpack.c.l.b16 %v292
        %v979 = vunpack.c.h.b16 %v292
        %v980 = vunpack.c.l.b16 %v293
        %v981 = vunpack.c.h.b16 %v293
        %v982 = vunpack.c.l.b16 %v294
        %v983 = vunpack.c.h.b16 %v294
        %v984 = vunpack.c.l.b16 %v295
        %v985 = vunpack.c.h.b16 %v295
        %v986 = vunpack.c.l.b16 %v296
        %v987 = vunpack.c.h.b16 %v296
        %v988 = vunpack.c.l.b16 %v297
        %v989 = vunpack.c.h.b16 %v297
        %v990 = vunpack.c.l.b16 %v298
        %v991 = vunpack.c.h.b16 %v298
        %v992 = vunpack.c.l.b16 %v299
        %v993 = vunpack.c.h.b16 %v299
        %v994 = vunpack.c.l.b16 %v300
        %v995 = vunpack.c.h.b16 %v300
        %v996 = vunpack.c.l.b16 %v301
        %v997 = vunpack.c.h.b16 %v301
        %v998 = vunpack.c.l.b16 %v302
        %v999 = vunpack.c.h.b16 %v302
        %v1000 = vunpack.c.l.b16 %v303
        %v1001 = vunpack.c.h.b16 %v303
        %v1002 = vunpack.c.l.b16 %v304
        %v1003 = vunpack.c.h.b16 %v304
        %v1004 = vunpack.c.l.b16 %v305
        %v1005 = vunpack.c.h.b16 %v305
        %v1006 = vunpack.c.l.b16 %v306
        %v1007 = vunpack.c.h.b16 %v306
        %v1008 = vunpack.c.l.b16 %v307
        %v1009 = vunpack.c.h.b16 %v307
        %v1010 = vunpack.c.l.b16 %v308
        %v1011 = vunpack.c.h.b16 %v308
        %v1012 = vunpack.c.l.b16 %v309
        %v1013 = vunpack.c.h.b16 %v309
        %v1014 = vunpack.c.l.b16 %v310
        %v1015 = vunpack.c.h.b16 %v310
        %v1016 = vunpack.c.l.b16 %v311
        %v1017 = vunpack.c.h.b16 %v311
        %v1018 = vunpack.c.l.b16 %v312
        %v1019 = vunpack.c.h.b16 %v312
        %v1020 = vunpack.c.l.b16 %v313
        %v1021 = vunpack.c.h.b16 %v313
        %v1022 = vunpack.c.l.b16 %v314
        %v1023 = vunpack.c.h.b16 %v314
        %v1024 = vunpack.c.l.b16 %v315
        %v1025 = vunpack.c.h.b16 %v315
        %v1026 = vunpack.c.l.b16 %v316
        %v1027 = vunpack.c.h.b16 %v316
        %v1028 = vunpack.c.l.b16 %v317
        %v1029 = vunpack.c.h.b16 %v317
        %v1030 = vunpack.c.l.b16 %v318
        %v1031 = vunpack.c.h.b16 %v318
        %v1032 = vunpack.c.l.b16 %v319
        %v1033 = vunpack.c.h.b16 %v319
        %v1034 = vunpack.c.l.b16 %v320
        %v1035 = vunpack.c.h.b16 %v320
        %v1036 = vunpack.c.l.b16 %v321
        %v1037 = vunpack.c.h.b16 %v321
        %v1038 = vunpack.c.l.b16 %v322
        %v1039 = vunpack.c.h.b16 %v322
        %v1040 = vunpack.c.l.b16 %v323
        %v1041 = vunpack.c.h.b16 %v323
        %v1042 = vunpack.c.l.b16 %v324
        %v1043 = vunpack.c.h.b16 %v324
        %v1044 = vunpack.c.l.b16 %v325
        %v1045 = vunpack.c.h.b16 %v325
        %v1046 = vunpack.c.l.b16 %v326
        %v1047 = vunpack.c.h.b16 %v326
        %v1048 = vunpack.c.l.b16 %v327
        %v1049 = vunpack.c.h.b16 %v327
        %v1050 = vunpack.c.l.b16 %v328
        %v1051 = vunpack.c.h.b16 %v328
        %v1052 = vunpack.c.l.b16 %v329
        %v1053 = vunpack.c.h.b16 %v329
        %v1054 = vunpack.c.l.b16 %v330
        %v1055 = vunpack.c.h.b16 %v330
        %v1056 = vunpack.c.l.b16 %v331
        %v1057 = vunpack.c.h.b16 %v331
        %v1058 = vunpack.c.l.b16 %v332
        %v1059 = vunpack.c.h.b16 %v332
        %v1060 = vunpack.c.l.b16 %v333
        %v1061 = vunpack.c.h.b16 %v333
        %v1062 = vunpack.c.l.b16 %v334
        %v1063 = vunpack.c.h.b16 %v334
        %v1064 = vunpack.c.l.b16 %v335
        %v1065 = vunpack.c.h.b16 %v335
        %v1066 = vunpack.c.l.b16 %v336
        %v1067 = vunpack.c.h.b16 %v336
        %v1068 = vunpack.c.l.b16 %v337
        %v1069 = vunpack.c.h.b16 %v337
        %v1070 = vunpack.c.l.b16 %v338
        %v1071 = vunpack.c.h.b16 %v338
        %v1072 = vunpack.c.l.b16 %v339
        %v1073 = vunpack.c.h.b16 %v339
        %v1074 = vunpack.c.l.b16 %v340
        %v1075 = vunpack.c.h.b16 %v340
        %v1076 = vunpack.c.l.b16 %v341
        %v1077 = vunpack.c.h.b16 %v341
        %v1078 = vunpack.c.l.b16 %v342
        %v1079 = vunpack.c.h.b16 %v342
        %v1080 = vunpack.c.l.b16 %v343
        %v1081 = vunpack.c.h.b16 %v343
        %v1082 = vunpack.c.l.b16 %v344
        %v1083 = vunpack.c.h.b16 %v344
        %v1084 = vunpack.c.l.b16 %v345
        %v1085 = vunpack.c.h.b16 %v345
        %v1086 = vunpack.c.l.b16 %v346
        %v1087 = vunpack.c.h.b16 %v346
        %v1088 = vunpack.c.l.b16 %v347
        %v1089 = vunpack.c.h.b16 %v347
        %v1090 = vunpack.c.l.b16 %v348
        %v1091 = vunpack.c.h.b16 %v348
        %v1092 = vunpack.c.l.b16 %v349
        %v1093 = vunpack.c.h.b16 %v349
        %v1094 = vunpack.c.l.b16 %v350
        %v1095 = vunpack.c.h.b16 %v350
        %v1096 = vunpack.c.l.b16 %v351
        %v1097 = vunpack.c.h.b16 %v351
        %v1098 = vunpack.c.l.b16 %v352
        %v1099 = vunpack.c.h.b16 %v352
        %v1100 = vunpack.c.l.b16 %v353
        %v1101 = vunpack.c.h.b16 %v353
        %v1102 = vunpack.c.l.b16 %v354
        %v1103 = vunpack.c.h.b16 %v354
        %v1104 = vunpack.c.l.b16 %v355
        %v1105 = vunpack.c.h.b16 %v355
        %v1106 = vunpack.c.l.b16 %v356
        %v1107 = vunpack.c.h.b16 %v356
        %v1108 = vunpack.c.l.b16 %v357
        %v1109 = vunpack.c.h.b16 %v357
        %v1110 = vunpack.c.l.b16 %v358
        %v1111 = vunpack.c.h.b16 %v358
        %v1112 = vunpack.c.l.b16 %v359
        %v1113 = vunpack.c.h.b16 %v359
        %v1114 = vunpack.c.l.b16 %v360
        %v1115 = vunpack.c.h.b16 %v360
        %v1116 = vunpack.c.l.b16 %v361
        %v1117 = vunpack.c.h.b16 %v361
        %v1118 = vunpack.c.l.b16 %v362
        %v1119 = vunpack.c.h.b16 %v362
        %v1120 = vunpack.c.l.b16 %v363
        %v1121 = vunpack.c.h.b16 %v363
        %v1122 = vunpack.c.l.b16 %v364
        %v1123 = vunpack.c.h.b16 %v364
        %v1124 = vunpack.c.l.b16 %v365
        %v1125 = vunpack.c.h.b16 %v365
        %v1126 = vunpack.c.l.b16 %v366
        %v1127 = vunpack.c.h.b16 %v366
        %v1128 = vunpack.c.l.b16 %v367
        %v1129 = vunpack.c.h.b16 %v367
        %v1130 = vunpack.c.l.b16 %v368
        %v1131 = vunpack.c.h.b16 %v368
        %v1132 = vunpack.c.l.b16 %v369
        %v1133 = vunpack.c.h.b16 %v369
        %v1134 = vunpack.c.l.b16 %v370
        %v1135 = vunpack.c.h.b16 %v370
        %v1136 = vunpack.c.l.b16 %v371
        %v1137 = vunpack.c.h.b16 %v371
        %v1138 = vunpack.c.l.b16 %v372
        %v1139 = vunpack.c.h.b16 %v372
        %v1140 = vunpack.c.l.b16 %v373
        %v1141 = vunpack.c.h.b16 %v373
        %v1142 = vunpack.c.l.b16 %v374
        %v1143 = vunpack.c.h.b16 %v374
        %v1144 = vunpack.c.l.b16 %v375
        %v1145 = vunpack.c.h.b16 %v375
        %v1146 = vunpack.c.l.b16 %v376
        %v1147 = vunpack.c.h.b16 %v376
        %v1148 = vunpack.c.l.b16 %v377
        %v1149 = vunpack.c.h.b16 %v377
        %v1150 = vunpack.c.l.b16 %v378
        %v1151 = vunpack.c.h.b16 %v378
        %v1152 = vunpack.c.l.b16 %v379
        %v1153 = vunpack.c.h.b16 %v379
        %v1154 = vunpack.c.l.b16 %v380
        %v1155 = vunpack.c.h.b16 %v380
        %v1156 = vunpack.c.l.b16 %v381
        %v1157 = vunpack.c.h.b16 %v381
        %v1158 = vunpack.c.l.b16 %v382
        %v1159 = vunpack.c.h.b16 %v382
        %v1160 = vunpack.c.l.b16 %v383
        %v1161 = vunpack.c.h.b16 %v383
        %v1162 = vunpack.c.l.b16 %v384
        %v1163 = vunpack.c.h.b16 %v384
        %v1164 = vunpack.c.l.b16 %v385
        %v1165 = vunpack.c.h.b16 %v385
        %v1166 = vunpack.c.l.b16 %v386
        %v1167 = vunpack.c.h.b16 %v386
        %v1168 = vunpack.c.l.b16 %v387
        %v1169 = vunpack.c.h.b16 %v387
        %v1170 = vunpack.c.l.b16 %v388
        %v1171 = vunpack.c.h.b16 %v388
        %v1172 = vunpack.c.l.b16 %v389
        %v1173 = vunpack.c.h.b16 %v389
        %v1174 = vunpack.c.l.b16 %v390
        %v1175 = vunpack.c.h.b16 %v390
        %v1176 = vunpack.c.l.b16 %v391
        %v1177 = vunpack.c.h.b16 %v391
        %v1178 = vunpack.c.l.b16 %v392
        %v1179 = vunpack.c.h.b16 %v392
        %v1180 = vunpack.c.l.b16 %v393
        %v1181 = vunpack.c.h.b16 %v393
        %v1182 = vunpack.c.l.b16 %v394
        %v1183 = vunpack.c.h.b16 %v394
        %v1184 = vunpack.c.l.b16 %v395
        %v1185 = vunpack.c.h.b16 %v395
        %v1186 = vunpack.c.l.b16 %v396
        %v1187 = vunpack.c.h.b16 %v396
        %v1188 = vunpack.c.l.b16 %v397
        %v1189 = vunpack.c.h.b16 %v397
        %v1190 = vunpack.c.l.b16 %v398
        %v1191 = vunpack.c.h.b16 %v398
        %v1192 = vunpack.c.l.b16 %v399
        %v1193 = vunpack.c.h.b16 %v399
        %v1194 = vunpack.c.l.b16 %v400
        %v1195 = vunpack.c.h.b16 %v400
        %v1196 = vunpack.c.l.b16 %v401
        %v1197 = vunpack.c.h.b16 %v401
        %v1198 = vunpack.c.l.b16 %v402
        %v1199 = vunpack.c.h.b16 %v402
        %v1200 = vunpack.c.l.b16 %v403
        %v1201 = vunpack.c.h.b16 %v403
        %v1202 = vunpack.c.l.b16 %v404
        %v1203 = vunpack.c.h.b16 %v404
        %v1204 = vunpack.c.l.b16 %v405
        %v1205 = vunpack.c.h.b16 %v405
        %v1206 = vunpack.c.l.b16 %v406
        %v1207 = vunpack.c.h.b16 %v406
        %v1208 = vunpack.c.l.b16 %v407
        %v1209 = vunpack.c.h.b16 %v407
        %v1210 = vunpack.c.l.b16 %v408
        %v1211 = vunpack.c.h.b16 %v408
        %v1212 = vunpack.c.l.b16 %v409
        %v1213 = vunpack.c.h.b16 %v409
        %v1214 = vunpack.c.l.b16 %v410
        %v1215 = vunpack.c.h.b16 %v410
        %v1216 = vunpack.c.l.b16 %v411
        %v1217 = vunpack.c.h.b16 %v411
        %v1218 = vunpack.c.l.b16 %v412
        %v1219 = vunpack.c.h.b16 %v412
        %v1220 = vunpack.c.l.b16 %v413
        %v1221 = vunpack.c.h.b16 %v413
        %v1222 = vunpack.c.l.b16 %v414
        %v1223 = vunpack.c.h.b16 %v414
        %v1224 = vunpack.c.l.b16 %v415
        %v1225 = vunpack.c.h.b16 %v415
        %v1226 = vunpack.c.l.b16 %v416
        %v1227 = vunpack.c.h.b16 %v416
        %v1228 = vunpack.c.l.b16 %v417
        %v1229 = vunpack.c.h.b16 %v417
        %v1230 = vunpack.c.l.b16 %v418
        %v1231 = vunpack.c.h.b16 %v418
        %v1232 = vunpack.c.l.b16 %v419
        %v1233 = vunpack.c.h.b16 %v419
        %v1234 = vunpack.c.l.b16 %v420
        %v1235 = vunpack.c.h.b16 %v420
        %v1236 = vunpack.c.l.b16 %v421
        %v1237 = vunpack.c.h.b16 %v421
        %v1238 = vunpack.c.l.b16 %v422
        %v1239 = vunpack.c.h.b16 %v422
        %v1240 = vunpack.c.l.b16 %v423
        %v1241 = vunpack.c.h.b16 %v423
        %v1242 = vunpack.c.l.b16 %v424
        %v1243 = vunpack.c.h.b16 %v424
        %v1244 = vunpack.c.l.b16 %v425
        %v1245 = vunpack.c.h.b16 %v425
        %v1246 = vunpack.c.l.b16 %v426
        %v1247 = vunpack.c.h.b16 %v426
        %v1248 = vunpack.c.l.b16 %v427
        %v1249 = vunpack.c.h.b16 %v427
        %v1250 = vunpack.c.l.b16 %v428
        %v1251 = vunpack.c.h.b16 %v428
        %v1252 = vunpack.c.l.b16 %v429
        %v1253 = vunpack.c.h.b16 %v429
        %v1254 = vunpack.c.l.b16 %v430
        %v1255 = vunpack.c.h.b16 %v430
        %v1256 = vunpack.c.l.b16 %v431
        %v1257 = vunpack.c.h.b16 %v431
        %v1258 = vunpack.c.l.b16 %v432
        %v1259 = vunpack.c.h.b16 %v432
        %v1260 = vunpack.c.l.b16 %v433
        %v1261 = vunpack.c.h.b16 %v433
        %v1262 = vunpack.c.l.b16 %v434
        %v1263 = vunpack.c.h.b16 %v434
        %v1264 = vunpack.c.l.b16 %v435
        %v1265 = vunpack.c.h.b16 %v435
        %v1266 = vunpack.c.l.b16 %v436
        %v1267 = vunpack.c.h.b16 %v436
        %v1268 = vunpack.c.l.b16 %v437
        %v1269 = vunpack.c.h.b16 %v437
        %v1270 = vunpack.c.l.b16 %v438
        %v1271 = vunpack.c.h.b16 %v438
        %v1272 = vunpack.c.l.b16 %v439
        %v1273 = vunpack.c.h.b16 %v439
        %v1274 = vunpack.c.l.b16 %v440
        %v1275 = vunpack.c.h.b16 %v440
        %v1276 = vunpack.c.l.b16 %v441
        %v1277 = vunpack.c.h.b16 %v441
        %v1278 = vunpack.c.l.b16 %v442
        %v1279 = vunpack.c.h.b16 %v442
        %v1280 = vunpack.c.l.b16 %v443
        %v1281 = vunpack.c.h.b16 %v443
        %v1282 = vunpack.c.l.b16 %v444
        %v1283 = vunpack.c.h.b16 %v444
        %v1284 = vunpack.c.l.b16 %v445
        %v1285 = vunpack.c.h.b16 %v445
        %v1286 = vunpack.c.l.b16 %v446
        %v1287 = vunpack.c.h.b16 %v446
        %v1288 = vunpack.c.l.b16 %v447
        %v1289 = vunpack.c.h.b16 %v447
        %v1290 = vunpack.c.l.b16 %v448
        %v1291 = vunpack.c.h.b16 %v448
        %v1292 = vunpack.c.l.b16 %v449
        %v1293 = vunpack.c.h.b16 %v449
        %v1294 = vunpack.c.l.b16 %v450
        %v1295 = vunpack.c.h.b16 %v450
        %v1296 = vunpack.c.l.b16 %v451
        %v1297 = vunpack.c.h.b16 %v451
        %v1298 = vunpack.c.l.b16 %v452
        %v1299 = vunpack.c.h.b16 %v452
        %v1300 = vunpack.c.l.b16 %v453
        %v1301 = vunpack.c.h.b16 %v453
        %v1302 = vunpack.c.l.b16 %v454
        %v1303 = vunpack.c.h.b16 %v454
        %v1304 = vunpack.c.l.b16 %v455
        %v1305 = vunpack.c.h.b16 %v455
        %v1306 = vunpack.c.l.b16 %v456
        %v1307 = vunpack.c.h.b16 %v456
        %v1308 = vunpack.c.l.b16 %v457
        %v1309 = vunpack.c.h.b16 %v457
        %v1310 = vunpack.c.l.b16 %v458
        %v1311 = vunpack.c.h.b16 %v458
        %v1312 = vunpack.c.l.b16 %v459
        %v1313 = vunpack.c.h.b16 %v459
        %v1314 = vunpack.c.l.b16 %v460
        %v1315 = vunpack.c.h.b16 %v460
        %v1316 = vunpack.c.l.b16 %v461
        %v1317 = vunpack.c.h.b16 %v461
        %v1318 = vunpack.c.l.b16 %v462
        %v1319 = vunpack.c.h.b16 %v462
        %v1320 = vunpack.c.l.b16 %v463
        %v1321 = vunpack.c.h.b16 %v463
        %v1322 = vunpack.c.l.b16 %v464
        %v1323 = vunpack.c.h.b16 %v464
        %v1324 = vunpack.c.l.b16 %v465
        %v1325 = vunpack.c.h.b16 %v465
        %v1326 = vunpack.c.l.b16 %v466
        %v1327 = vunpack.c.h.b16 %v466
        %v1328 = vunpack.c.l.b16 %v467
        %v1329 = vunpack.c.h.b16 %v467
        %v1330 = vunpack.c.l.b16 %v468
        %v1331 = vunpack.c.h.b16 %v468
        %v1332 = vunpack.c.l.b16 %v469
        %v1333 = vunpack.c.h.b16 %v469
        %v1334 = vunpack.c.l.b16 %v470
        %v1335 = vunpack.c.h.b16 %v470
        %v1336 = vunpack.c.l.b16 %v471
        %v1337 = vunpack.c.h.b16 %v471
        %v1338 = vunpack.c.l.b16 %v472
        %v1339 = vunpack.c.h.b16 %v472
        %v1340 = vunpack.c.l.b16 %v473
        %v1341 = vunpack.c.h.b16 %v473
        %v1342 = vunpack.c.l.b16 %v474
        %v1343 = vunpack.c.h.b16 %v474
        %v1344 = vunpack.c.l.b16 %v475
        %v1345 = vunpack.c.h.b16 %v475
        %v1346 = vunpack.c.l.b16 %v476
        %v1347 = vunpack.c.h.b16 %v476
        %v1348 = vunpack.c.l.b16 %v477
        %v1349 = vunpack.c.h.b16 %v477
        %v1350 = vunpack.c.l.b16 %v478
        %v1351 = vunpack.c.h.b16 %v478
        %v1352 = vunpack.c.l.b16 %v479
        %v1353 = vunpack.c.h.b16 %v479
        %v1354 = vunpack.c.l.b16 %v480
        %v1355 = vunpack.c.h.b16 %v480
        %v1356 = vunpack.c.l.b16 %v481
        %v1357 = vunpack.c.h.b16 %v481
        %v1358 = vunpack.c.l.b16 %v482
        %v1359 = vunpack.c.h.b16 %v482
        %v1360 = vunpack.c.l.b16 %v483
        %v1361 = vunpack.c.h.b16 %v483
        %v1362 = vunpack.c.l.b16 %v484
        %v1363 = vunpack.c.h.b16 %v484
        %v1364 = vunpack.c.l.b16 %v485
        %v1365 = vunpack.c.h.b16 %v485
        %v1366 = vunpack.c.l.b16 %v486
        %v1367 = vunpack.c.h.b16 %v486
        %v1368 = vunpack.c.l.b16 %v487
        %v1369 = vunpack.c.h.b16 %v487
        %v1370 = vunpack.c.l.b16 %v488
        %v1371 = vunpack.c.h.b16 %v488
        %v1372 = vunpack.c.l.b16 %v489
        %v1373 = vunpack.c.h.b16 %v489
        %v1374 = vunpack.c.l.b16 %v490
        %v1375 = vunpack.c.h.b16 %v490
        %v1376 = vunpack.c.l.b16 %v491
        %v1377 = vunpack.c.h.b16 %v491
        %v1378 = vunpack.c.l.b16 %v492
        %v1379 = vunpack.c.h.b16 %v492
        %v1380 = vunpack.c.l.b16 %v493
        %v1381 = vunpack.c.h.b16 %v493
        %v1382 = vunpack.c.l.b16 %v494
        %v1383 = vunpack.c.h.b16 %v494
        %v1384 = vunpack.c.l.b16 %v495
        %v1385 = vunpack.c.h.b16 %v495
        %v1386 = vunpack.c.l.b16 %v496
        %v1387 = vunpack.c.h.b16 %v496
        %v1388 = vunpack.c.l.b16 %v497
        %v1389 = vunpack.c.h.b16 %v497
        %v1390 = vunpack.c.l.b16 %v498
        %v1391 = vunpack.c.h.b16 %v498
        %v1392 = vunpack.c.l.b16 %v499
        %v1393 = vunpack.c.h.b16 %v499
        %v1394 = vunpack.c.l.b16 %v500
        %v1395 = vunpack.c.h.b16 %v500
        %v1396 = vunpack.c.l.b16 %v501
        %v1397 = vunpack.c.h.b16 %v501
        %v1398 = vpack.c.b16 %v828, %v822
        %v1399 = vpack.c.b16 %v829, %v823
        %v1400 = vpack.c.b16 %v830, %v824
        %v1401 = vpack.c.b16 %v831, %v825
        %v1402 = vpack.c.b16 %v832, %v826
        %v1403 = vpack.c.b16 %v833, %v827
        %v1404 = vpack.c.b16 %v840, %v834
        %v1405 = vpack.c.b16 %v841, %v835
        %v1406 = vpack.c.b16 %v842, %v836
        %v1407 = vpack.c.b16 %v843, %v837
        %v1408 = vpack.c.b16 %v844, %v838
        %v1409 = vpack.c.b16 %v845, %v839
        %v1410 = vpack.c.b16 %v852, %v846
        %v1411 = vpack.c.b16 %v853, %v847
        %v1412 = vpack.c.b16 %v854, %v848
        %v1413 = vpack.c.b16 %v855, %v849
        %v1414 = vpack.c.b16 %v856, %v850
        %v1415 = vpack.c.b16 %v857, %v851
        %v1416 = vpack.c.b16 %v864, %v858
        %v1417 = vpack.c.b16 %v865, %v859
        %v1418 = vpack.c.b16 %v866, %v860
        %v1419 = vpack.c.b16 %v867, %v861
        %v1420 = vpack.c.b16 %v868, %v862
        %v1421 = vpack.c.b16 %v869, %v863
        %v1422 = vpack.c.b16 %v876, %v870
        %v1423 = vpack.c.b16 %v877, %v871
        %v1424 = vpack.c.b16 %v878, %v872
        %v1425 = vpack.c.b16 %v879, %v873
        %v1426 = vpack.c.b16 %v880, %v874
        %v1427 = vpack.c.b16 %v881, %v875
        %v1428 = vpack.c.b16 %v888, %v882
        %v1429 = vpack.c.b16 %v889, %v883
        %v1430 = vpack.c.b16 %v890, %v884
        %v1431 = vpack.c.b16 %v891, %v885
        %v1432 = vpack.c.b16 %v892, %v886
        %v1433 = vpack.c.b16 %v893, %v887
        %v1434 = vpack.c.b16 %v900, %v894
        %v1435 = vpack.c.b16 %v901, %v895
        %v1436 = vpack.c.b16 %v902, %v896
        %v1437 = vpack.c.b16 %v903, %v897
        %v1438 = vpack.c.b16 %v904, %v898
        %v1439 = vpack.c.b16 %v905, %v899
        %v1440 = vpack.c.b16 %v912, %v906
        %v1441 = vpack.c.b16 %v913, %v907
        %v1442 = vpack.c.b16 %v914, %v908
        %v1443 = vpack.c.b16 %v915, %v909
        %v1444 = vpack.c.b16 %v916, %v910
        %v1445 = vpack.c.b16 %v917, %v911
        %v1446 = vpack.c.b16 %v924, %v918
        %v1447 = vpack.c.b16 %v925, %v919
        %v1448 = vpack.c.b16 %v926, %v920
        %v1449 = vpack.c.b16 %v927, %v921
        %v1450 = vpack.c.b16 %v928, %v922
        %v1451 = vpack.c.b16 %v929, %v923
        %v1452 = vpack.c.b16 %v936, %v930
        %v1453 = vpack.c.b16 %v937, %v931
        %v1454 = vpack.c.b16 %v938, %v932
        %v1455 = vpack.c.b16 %v939, %v933
        %v1456 = vpack.c.b16 %v940, %v934
        %v1457 = vpack.c.b16 %v941, %v935
        %v1458 = vpack.c.b16 %v948, %v942
        %v1459 = vpack.c.b16 %v949, %v943
        %v1460 = vpack.c.b16 %v950, %v944
        %v1461 = vpack.c.b16 %v951, %v945
        %v1462 = vpack.c.b16 %v952, %v946
        %v1463 = vpack.c.b16 %v953, %v947
        %v1464 = vpack.c.b16 %v960, %v954
        %v1465 = vpack.c.b16 %v961, %v955
        %v1466 = vpack.c.b16 %v962, %v956
        %v1467 = vpack.c.b16 %v963, %v957
        %v1468 = vpack.c.b16 %v964, %v958
        %v1469 = vpack.c.b16 %v965, %v959
        %v1470 = vpack.c.b16 %v972, %v966
        %v1471 = vpack.c.b16 %v973, %v967
        %v1472 = vpack.c.b16 %v974, %v968
        %v1473 = vpack.c.b16 %v975, %v969
        %v1474 = vpack.c.b16 %v976, %v970
        %v1475 = vpack.c.b16 %v977, %v971
        %v1476 = vpack.c.b16 %v984, %v978
        %v1477 = vpack.c.b16 %v985, %v979
        %v1478 = vpack.c.b16 %v986, %v980
        %v1479 = vpack.c.b16 %v987, %v981
        %v1480 = vpack.c.b16 %v988, %v982
        %v1481 = vpack.c.b16 %v989, %v983
        %v1482 = vpack.c.b16 %v996, %v990
        %v1483 = vpack.c.b16 %v997, %v991
        %v1484 = vpack.c.b16 %v998, %v992
        %v1485 = vpack.c.b16 %v999, %v993
        %v1486 = vpack.c.b16 %v1000, %v994
        %v1487 = vpack.c.b16 %v1001, %v995
        %v1488 = vpack.c.b16 %v1008, %v1002
        %v1489 = vpack.c.b16 %v1009, %v1003
        %v1490 = vpack.c.b16 %v1010, %v1004
        %v1491 = vpack.c.b16 %v1011, %v1005
        %v1492 = vpack.c.b16 %v1012, %v1006
        %v1493 = vpack.c.b16 %v1013, %v1007
        %v1494 = vpack.c.b16 %v1020, %v1014
        %v1495 = vpack.c.b16 %v1021, %v1015
        %v1496 = vpack.c.b16 %v1022, %v1016
        %v1497 = vpack.c.b16 %v1023, %v1017
        %v1498 = vpack.c.b16 %v1024, %v1018
        %v1499 = vpack.c.b16 %v1025, %v1019
        %v1500 = vpack.c.b16 %v1032, %v1026
        %v1501 = vpack.c.b16 %v1033, %v1027
        %v1502 = vpack.c.b16 %v1034, %v1028
        %v1503 = vpack.c.b16 %v1035, %v1029
        %v1504 = vpack.c.b16 %v1036, %v1030
        %v1505 = vpack.c.b16 %v1037, %v1031
        %v1506 = vpack.c.b16 %v1044, %v1038
        %v1507 = vpack.c.b16 %v1045, %v1039
        %v1508 = vpack.c.b16 %v1046, %v1040
        %v1509 = vpack.c.b16 %v1047, %v1041
        %v1510 = vpack.c.b16 %v1048, %v1042
        %v1511 = vpack.c.b16 %v1049, %v1043
        %v1512 = vpack.c.b16 %v1056, %v1050
        %v1513 = vpack.c.b16 %v1057, %v1051
        %v1514 = vpack.c.b16 %v1058, %v1052
        %v1515 = vpack.c.b16 %v1059, %v1053
        %v1516 = vpack.c.b16 %v1060, %v1054
        %v1517 = vpack.c.b16 %v1061, %v1055
        %v1518 = vpack.c.b16 %v1068, %v1062
        %v1519 = vpack.c.b16 %v1069, %v1063
        %v1520 = vpack.c.b16 %v1070, %v1064
        %v1521 = vpack.c.b16 %v1071, %v1065
        %v1522 = vpack.c.b16 %v1072, %v1066
        %v1523 = vpack.c.b16 %v1073, %v1067
        %v1524 = vpack.c.b16 %v1080, %v1074
        %v1525 = vpack.c.b16 %v1081, %v1075
        %v1526 = vpack.c.b16 %v1082, %v1076
        %v1527 = vpack.c.b16 %v1083, %v1077
        %v1528 = vpack.c.b16 %v1084, %v1078
        %v1529 = vpack.c.b16 %v1085, %v1079
        %v1530 = vpack.c.b16 %v1092, %v1086
        %v1531 = vpack.c.b16 %v1093, %v1087
        %v1532 = vpack.c.b16 %v1094, %v1088
        %v1533 = vpack.c.b16 %v1095, %v1089
        %v1534 = vpack.c.b16 %v1096, %v1090
        %v1535 = vpack.c.b16 %v1097, %v1091
        %v1536 = vpack.c.b16 %v1104, %v1098
        %v1537 = vpack.c.b16 %v1105, %v1099
        %v1538 = vpack.c.b16 %v1106, %v1100
        %v1539 = vpack.c.b16 %v1107, %v1101
        %v1540 = vpack.c.b16 %v1108, %v1102
        %v1541 = vpack.c.b16 %v1109, %v1103
        %v1542 = vpack.c.b16 %v1116, %v1110
        %v1543 = vpack.c.b16 %v1117, %v1111
        %v1544 = vpack.c.b16 %v1118, %v1112
        %v1545 = vpack.c.b16 %v1119, %v1113
        %v1546 = vpack.c.b16 %v1120, %v1114
        %v1547 = vpack.c.b16 %v1121, %v1115
        %v1548 = vpack.c.b16 %v1128, %v1122
        %v1549 = vpack.c.b16 %v1129, %v1123
        %v1550 = vpack.c.b16 %v1130, %v1124
        %v1551 = vpack.c.b16 %v1131, %v1125
        %v1552 = vpack.c.b16 %v1132, %v1126
        %v1553 = vpack.c.b16 %v1133, %v1127
        %v1554 = vpack.c.b16 %v1140, %v1134
        %v1555 = vpack.c.b16 %v1141, %v1135
        %v1556 = vpack.c.b16 %v1142, %v1136
        %v1557 = vpack.c.b16 %v1143, %v1137
        %v1558 = vpack.c.b16 %v1144, %v1138
        %v1559 = vpack.c.b16 %v1145, %v1139
        %v1560 = vpack.c.b16 %v1152, %v1146
        %v1561 = vpack.c.b16 %v1153, %v1147
        %v1562 = vpack.c.b16 %v1154, %v1148
        %v1563 = vpack.c.b16 %v1155, %v1149
        %v1564 = vpack.c.b16 %v1156, %v1150
        %v1565 = vpack.c.b16 %v1157, %v1151
        %v1566 = vpack.c.b16 %v1164, %v1158
        %v1567 = vpack.c.b16 %v1165, %v1159
        %v1568 = vpack.c.b16 %v1166, %v1160
        %v1569 = vpack.c.b16 %v1167, %v1161
        %v1570 = vpack.c.b16 %v1168, %v1162
        %v1571 = vpack.c.b16 %v1169, %v1163
        %v1572 = vpack.c.b16 %v1176, %v1170
        %v1573 = vpack.c.b16 %v1177, %v1171
        %v1574 = vpack.c.b16 %v1178, %v1172
        %v1575 = vpack.c.b16 %v1179, %v1173
        %v1576 = vpack.c.b16 %v1180, %v1174
        %v1577 = vpack.c.b16 %v1181, %v1175
        %v1578 = vpack.c.b16 %v1188, %v1182
        %v1579 = vpack.c.b16 %v1189, %v1183
        %v1580 = vpack.c.b16 %v1190, %v1184
        %v1581 = vpack.c.b16 %v1191, %v1185
        %v1582 = vpack.c.b16 %v1192, %v1186
        %v1583 = vpack.c.b16 %v1193, %v1187
        %v1584 = vpack.c.b16 %v1200, %v1194
        %v1585 = vpack.c.b16 %v1201, %v1195
        %v1586 = vpack.c.b16 %v1202, %v1196
        %v1587 = vpack.c.b16 %v1203, %v1197
        %v1588 = vpack.c.b16 %v1204, %v1198
        %v1589 = vpack.c.b16 %v1205, %v1199
        %v1590 = vpack.c.b16 %v1212, %v1206
        %v1591 = vpack.c.b16 %v1213, %v1207
        %v1592 = vpack.c.b16 %v1214, %v1208
        %v1593 = vpack.c.b16 %v1215, %v1209
        %v1594 = vpack.c.b16 %v1216, %v1210
        %v1595 = vpack.c.b16 %v1217, %v1211
        %v1596 = vpack.c.b16 %v1224, %v1218
        %v1597 = vpack.c.b16 %v1225, %v1219
        %v1598 = vpack.c.b16 %v1226, %v1220
        %v1599 = vpack.c.b16 %v1227, %v1221
        %v1600 = vpack.c.b16 %v1228, %v1222
        %v1601 = vpack.c.b16 %v1229, %v1223
        %v1602 = vpack.c.b16 %v1236, %v1230
        %v1603 = vpack.c.b16 %v1237, %v1231
        %v1604 = vpack.c.b16 %v1238, %v1232
        %v1605 = vpack.c.b16 %v1239, %v1233
        %v1606 = vpack.c.b16 %v1240, %v1234
        %v1607 = vpack.c.b16 %v1241, %v1235
        %v1608 = vpack.c.b16 %v1248, %v1242
        %v1609 = vpack.c.b16 %v1249, %v1243
        %v1610 = vpack.c.b16 %v1250, %v1244
        %v1611 = vpack.c.b16 %v1251, %v1245
        %v1612 = vpack.c.b16 %v1252, %v1246
        %v1613 = vpack.c.b16 %v1253, %v1247
        %v1614 = vpack.c.b16 %v1260, %v1254
        %v1615 = vpack.c.b16 %v1261, %v1255
        %v1616 = vpack.c.b16 %v1262, %v1256
        %v1617 = vpack.c.b16 %v1263, %v1257
        %v1618 = vpack.c.b16 %v1264, %v1258
        %v1619 = vpack.c.b16 %v1265, %v1259
        %v1620 = vpack.c.b16 %v1272, %v1266
        %v1621 = vpack.c.b16 %v1273, %v1267
        %v1622 = vpack.c.b16 %v1274, %v1268
        %v1623 = vpack.c.b16 %v1275, %v1269
        %v1624 = vpack.c.b16 %v1276, %v1270
        %v1625 = vpack.c.b16 %v1277, %v1271
        %v1626 = vpack.c.b16 %v1284, %v1278
        %v1627 = vpack.c.b16 %v1285, %v1279
        %v1628 = vpack.c.b16 %v1286, %v1280
        %v1629 = vpack.c.b16 %v1287, %v1281
        %v1630 = vpack.c.b16 %v1288, %v1282
        %v1631 = vpack.c.b16 %v1289, %v1283
        %v1632 = vpack.c.b16 %v1296, %v1290
        %v1633 = vpack.c.b16 %v1297, %v1291
        %v1634 = vpack.c.b16 %v1298, %v1292
        %v1635 = vpack.c.b16 %v1299, %v1293
        %v1636 = vpack.c.b16 %v1300, %v1294
        %v1637 = vpack.c.b16 %v1301, %v1295
        %v1638 = vpack.c.b16 %v1308, %v1302
        %v1639 = vpack.c.b16 %v1309, %v1303
        %v1640 = vpack.c.b16 %v1310, %v1304
        %v1641 = vpack.c.b16 %v1311, %v1305
        %v1642 = vpack.c.b16 %v1312, %v1306
        %v1643 = vpack.c.b16 %v1313, %v1307
        %v1644 = vpack.c.b16 %v1320, %v1314
        %v1645 = vpack.c.b16 %v1321, %v1315
        %v1646 = vpack.c.b16 %v1322, %v1316
        %v1647 = vpack.c.b16 %v1323, %v1317
        %v1648 = vpack.c.b16 %v1324, %v1318
        %v1649 = vpack.c.b16 %v1325, %v1319
        %v1650 = vpack.c.b16 %v1332, %v1326
        %v1651 = vpack.c.b16 %v1333, %v1327
        %v1652 = vpack.c.b16 %v1334, %v1328
        %v1653 = vpack.c.b16 %v1335, %v1329
        %v1654 = vpack.c.b16 %v1336, %v1330
        %v1655 = vpack.c.b16 %v1337, %v1331
        %v1656 = vpack.c.b16 %v1344, %v1338
        %v1657 = vpack.c.b16 %v1345, %v1339
        %v1658 = vpack.c.b16 %v1346, %v1340
        %v1659 = vpack.c.b16 %v1347, %v1341
        %v1660 = vpack.c.b16 %v1348, %v1342
        %v1661 = vpack.c.b16 %v1349, %v1343
        %v1662 = vpack.c.b16 %v1356, %v1350
        %v1663 = vpack.c.b16 %v1357, %v1351
        %v1664 = vpack.c.b16 %v1358, %v1352
        %v1665 = vpack.c.b16 %v1359, %v1353
        %v1666 = vpack.c.b16 %v1360, %v1354
        %v1667 = vpack.c.b16 %v1361, %v1355
        %v1668 = vpack.c.b16 %v1368, %v1362
        %v1669 = vpack.c.b16 %v1369, %v1363
        %v1670 = vpack.c.b16 %v1370, %v1364
        %v1671 = vpack.c.b16 %v1371, %v1365
        %v1672 = vpack.c.b16 %v1372, %v1366
        %v1673 = vpack.c.b16 %v1373, %v1367
        %v1674 = vpack.c.b16 %v1380, %v1374
        %v1675 = vpack.c.b16 %v1381, %v1375
        %v1676 = vpack.c.b16 %v1382, %v1376
        %v1677 = vpack.c.b16 %v1383, %v1377
        %v1678 = vpack.c.b16 %v1384, %v1378
        %v1679 = vpack.c.b16 %v1385, %v1379
        %v1680 = vpack.c.b16 %v1392, %v1386
        %v1681 = vpack.c.b16 %v1393, %v1387
        %v1682 = vpack.c.b16 %v1394, %v1388
        %v1683 = vpack.c.b16 %v1395, %v1389
        %v1684 = vpack.c.b16 %v1396, %v1390
        %v1685 = vpack.c.b16 %v1397, %v1391
        %1974 = vmatprep.subr.bf16.mxu0 %v1399
        %1975 = vmatpush1.bf16.msra.mxu0 %v1398
        %1976 = vmatprep.subr.bf16.mxu0 %v1405
        %1977 = vmatpush1.bf16.msra.mxu0 %v1404
        %1978 = vmatprep.subr.bf16.mxu0 %v1411
        %1979 = vmatpush1.bf16.msra.mxu0 %v1410
        %1980 = vmatprep.subr.bf16.mxu0 %v1417
        %1981 = vmatpush1.bf16.msra.mxu0 %v1416
        %1982 = vmatprep.subr.bf16.mxu0 %v1423
        %1983 = vmatpush1.bf16.msra.mxu0 %v1422
        %1984 = vmatprep.subr.bf16.mxu0 %v1429
        %1985 = vmatpush1.bf16.msra.mxu0 %v1428
        %1986 = vmatprep.subr.bf16.mxu0 %v1435
        %1987 = vmatpush1.bf16.msra.mxu0 %v1434
        %1988 = vmatprep.subr.bf16.mxu0 %v1441
        %1989 = vmatpush1.bf16.msra.mxu0 %v1440
        %1990 = vmatprep.subr.bf16.mxu0 %v1447
        %1991 = vmatpush1.bf16.msra.mxu0 %v1446
        %1992 = vmatprep.subr.bf16.mxu0 %v1453
        %1993 = vmatpush1.bf16.msra.mxu0 %v1452
        %1994 = vmatprep.subr.bf16.mxu0 %v1459
        %1995 = vmatpush1.bf16.msra.mxu0 %v1458
        %1996 = vmatprep.subr.bf16.mxu0 %v1465
        %1997 = vmatpush1.bf16.msra.mxu0 %v1464
        %1998 = vmatprep.subr.bf16.mxu0 %v1471
        %1999 = vmatpush1.bf16.msra.mxu0 %v1470
        %2000 = vmatprep.subr.bf16.mxu0 %v1477
        %2001 = vmatpush1.bf16.msra.mxu0 %v1476
        %2002 = vmatprep.subr.bf16.mxu0 %v1483
        %2003 = vmatpush1.bf16.msra.mxu0 %v1482
        %2004 = vmatprep.subr.bf16.mxu0 %v1489
        %2005 = vmatpush1.bf16.msra.mxu0 %v1488
        %2006 = vmatprep.mubr.bf16.mxu0 %v209
        %2007 = vmatmul.mubr.bf16.gmra.mrb[0].mxu0 %v208
        %v2008 = vpop.f32.mrb[0].mxu0
        %v2009 = vadd.f32 %v507, %v2008
        %v2010 = vpop.f32.mrb[0].mxu0
        %v2011 = vadd.f32 %v511, %v2010
        %v2012 = vpop.f32.mrb[0].mxu0
        %v2013 = vpop.f32.mrb[0].mxu0
        %2014 = vdwg.mxu0
        %2015 = vmatprep.subr.bf16.mxu0 %v1495
        %2016 = vmatpush1.bf16.msra.mxu0 %v1494
        %2017 = vmatprep.subr.bf16.mxu0 %v1501
        %2018 = vmatpush1.bf16.msra.mxu0 %v1500
        %2019 = vmatprep.subr.bf16.mxu0 %v1507
        %2020 = vmatpush1.bf16.msra.mxu0 %v1506
        %2021 = vmatprep.subr.bf16.mxu0 %v1513
        %2022 = vmatpush1.bf16.msra.mxu0 %v1512
        %2023 = vmatprep.subr.bf16.mxu0 %v1519
        %2024 = vmatpush1.bf16.msra.mxu0 %v1518
        %2025 = vmatprep.subr.bf16.mxu0 %v1525
        %2026 = vmatpush1.bf16.msra.mxu0 %v1524
        %2027 = vmatprep.subr.bf16.mxu0 %v1531
        %2028 = vmatpush1.bf16.msra.mxu0 %v1530
        %2029 = vmatprep.subr.bf16.mxu0 %v1537
        %2030 = vmatpush1.bf16.msra.mxu0 %v1536
        %2031 = vmatprep.subr.bf16.mxu0 %v1543
        %2032 = vmatpush1.bf16.msra.mxu0 %v1542
        %2033 = vmatprep.subr.bf16.mxu0 %v1549
        %2034 = vmatpush1.bf16.msra.mxu0 %v1548
        %2035 = vmatprep.subr.bf16.mxu0 %v1555
        %2036 = vmatpush1.bf16.msra.mxu0 %v1554
        %2037 = vmatprep.subr.bf16.mxu0 %v1561
        %2038 = vmatpush1.bf16.msra.mxu0 %v1560
        %2039 = vmatprep.subr.bf16.mxu0 %v1567
        %2040 = vmatpush1.bf16.msra.mxu0 %v1566
        %2041 = vmatprep.subr.bf16.mxu0 %v1573
        %2042 = vmatpush1.bf16.msra.mxu0 %v1572
        %2043 = vmatprep.subr.bf16.mxu0 %v1579
        %2044 = vmatpush1.bf16.msra.mxu0 %v1578
        %2045 = vmatprep.subr.bf16.mxu0 %v1585
        %2046 = vmatpush1.bf16.msra.mxu0 %v1584
        %2047 = vmatprep.mubr.bf16.mxu0 %v211
        %2048 = vmatmul.mubr.bf16.gmra.mrb[0].mxu0 %v210
        %v2049 = vpop.f32.mrb[0].mxu0
        %v2050 = vadd.f32 %v2009, %v2049
        %v2051 = vpop.f32.mrb[0].mxu0
        %v2052 = vadd.f32 %v2011, %v2051
        %v2053 = vpop.f32.mrb[0].mxu0
        %v2054 = vpop.f32.mrb[0].mxu0
        %2055 = vdwg.mxu0
        %2056 = vmatprep.subr.bf16.mxu0 %v1591
        %2057 = vmatpush1.bf16.msra.mxu0 %v1590
        %2058 = vmatprep.subr.bf16.mxu0 %v1597
        %2059 = vmatpush1.bf16.msra.mxu0 %v1596
        %2060 = vmatprep.subr.bf16.mxu0 %v1603
        %2061 = vmatpush1.bf16.msra.mxu0 %v1602
        %2062 = vmatprep.subr.bf16.mxu0 %v1609
        %2063 = vmatpush1.bf16.msra.mxu0 %v1608
        %2064 = vmatprep.subr.bf16.mxu0 %v1615
        %2065 = vmatpush1.bf16.msra.mxu0 %v1614
        %2066 = vmatprep.subr.bf16.mxu0 %v1621
        %2067 = vmatpush1.bf16.msra.mxu0 %v1620
        %2068 = vmatprep.subr.bf16.mxu0 %v1627
        %2069 = vmatpush1.bf16.msra.mxu0 %v1626
        %2070 = vmatprep.subr.bf16.mxu0 %v1633
        %2071 = vmatpush1.bf16.msra.mxu0 %v1632
        %2072 = vmatprep.subr.bf16.mxu0 %v1639
        %2073 = vmatpush1.bf16.msra.mxu0 %v1638
        %2074 = vmatprep.subr.bf16.mxu0 %v1645
        %2075 = vmatpush1.bf16.msra.mxu0 %v1644
        %2076 = vmatprep.subr.bf16.mxu0 %v1651
        %2077 = vmatpush1.bf16.msra.mxu0 %v1650
        %2078 = vmatprep.subr.bf16.mxu0 %v1657
        %2079 = vmatpush1.bf16.msra.mxu0 %v1656
        %2080 = vmatprep.subr.bf16.mxu0 %v1663
        %2081 = vmatpush1.bf16.msra.mxu0 %v1662
        %2082 = vmatprep.subr.bf16.mxu0 %v1669
        %2083 = vmatpush1.bf16.msra.mxu0 %v1668
        %2084 = vmatprep.subr.bf16.mxu0 %v1675
        %2085 = vmatpush1.bf16.msra.mxu0 %v1674
        %2086 = vmatprep.subr.bf16.mxu0 %v1681
        %2087 = vmatpush1.bf16.msra.mxu0 %v1680
        %2088 = vmatprep.mubr.bf16.mxu0 %v213
        %2089 = vmatmul.mubr.bf16.gmra.mrb[0].mxu0 %v212
        %v2090 = vpop.f32.mrb[0].mxu0
        %v2091 = vadd.f32 %v2050, %v2090
        %v2092 = vpop.f32.mrb[0].mxu0
        %v2093 = vadd.f32 %v2052, %v2092
        %v2094 = vpop.f32.mrb[0].mxu0
        %v2095 = vpop.f32.mrb[0].mxu0
        %2096 = vdwg.mxu0
        %2097 = vmatprep.subr.bf16.mxu0 %v1401
        %2098 = vmatpush1.bf16.msra.mxu0 %v1400
        %2099 = vmatprep.subr.bf16.mxu0 %v1407
        %2100 = vmatpush1.bf16.msra.mxu0 %v1406
        %2101 = vmatprep.subr.bf16.mxu0 %v1413
        %2102 = vmatpush1.bf16.msra.mxu0 %v1412
        %2103 = vmatprep.subr.bf16.mxu0 %v1419
        %2104 = vmatpush1.bf16.msra.mxu0 %v1418
        %2105 = vmatprep.subr.bf16.mxu0 %v1425
        %2106 = vmatpush1.bf16.msra.mxu0 %v1424
        %2107 = vmatprep.subr.bf16.mxu0 %v1431
        %2108 = vmatpush1.bf16.msra.mxu0 %v1430
        %2109 = vmatprep.subr.bf16.mxu0 %v1437
        %2110 = vmatpush1.bf16.msra.mxu0 %v1436
        %2111 = vmatprep.subr.bf16.mxu0 %v1443
        %2112 = vmatpush1.bf16.msra.mxu0 %v1442
        %2113 = vmatprep.subr.bf16.mxu0 %v1449
        %2114 = vmatpush1.bf16.msra.mxu0 %v1448
        %2115 = vmatprep.subr.bf16.mxu0 %v1455
        %2116 = vmatpush1.bf16.msra.mxu0 %v1454
        %2117 = vmatprep.subr.bf16.mxu0 %v1461
        %2118 = vmatpush1.bf16.msra.mxu0 %v1460
        %2119 = vmatprep.subr.bf16.mxu0 %v1467
        %2120 = vmatpush1.bf16.msra.mxu0 %v1466
        %2121 = vmatprep.subr.bf16.mxu0 %v1473
        %2122 = vmatpush1.bf16.msra.mxu0 %v1472
        %2123 = vmatprep.subr.bf16.mxu0 %v1479
        %2124 = vmatpush1.bf16.msra.mxu0 %v1478
        %2125 = vmatprep.subr.bf16.mxu0 %v1485
        %2126 = vmatpush1.bf16.msra.mxu0 %v1484
        %2127 = vmatprep.subr.bf16.mxu0 %v1491
        %2128 = vmatpush1.bf16.msra.mxu0 %v1490
        %2129 = vmatprep.mubr.bf16.mxu0 %v209
        %2130 = vmatmul.mubr.bf16.gmra.mrb[0].mxu0 %v208
        %v2131 = vpop.f32.mrb[0].mxu0
        %v2132 = vadd.f32 %v515, %v2131
        %v2133 = vpop.f32.mrb[0].mxu0
        %v2134 = vadd.f32 %v519, %v2133
        %v2135 = vpop.f32.mrb[0].mxu0
        %v2136 = vpop.f32.mrb[0].mxu0
        %2137 = vdwg.mxu0
        %2138 = vmatprep.subr.bf16.mxu0 %v1497
        %2139 = vmatpush1.bf16.msra.mxu0 %v1496
        %2140 = vmatprep.subr.bf16.mxu0 %v1503
        %2141 = vmatpush1.bf16.msra.mxu0 %v1502
        %2142 = vmatprep.subr.bf16.mxu0 %v1509
        %2143 = vmatpush1.bf16.msra.mxu0 %v1508
        %2144 = vmatprep.subr.bf16.mxu0 %v1515
        %2145 = vmatpush1.bf16.msra.mxu0 %v1514
        %2146 = vmatprep.subr.bf16.mxu0 %v1521
        %2147 = vmatpush1.bf16.msra.mxu0 %v1520
        %2148 = vmatprep.subr.bf16.mxu0 %v1527
        %2149 = vmatpush1.bf16.msra.mxu0 %v1526
        %2150 = vmatprep.subr.bf16.mxu0 %v1533
        %2151 = vmatpush1.bf16.msra.mxu0 %v1532
        %2152 = vmatprep.subr.bf16.mxu0 %v1539
        %2153 = vmatpush1.bf16.msra.mxu0 %v1538
        %2154 = vmatprep.subr.bf16.mxu0 %v1545
        %2155 = vmatpush1.bf16.msra.mxu0 %v1544
        %2156 = vmatprep.subr.bf16.mxu0 %v1551
        %2157 = vmatpush1.bf16.msra.mxu0 %v1550
        %2158 = vmatprep.subr.bf16.mxu0 %v1557
        %2159 = vmatpush1.bf16.msra.mxu0 %v1556
        %2160 = vmatprep.subr.bf16.mxu0 %v1563
        %2161 = vmatpush1.bf16.msra.mxu0 %v1562
        %2162 = vmatprep.subr.bf16.mxu0 %v1569
        %2163 = vmatpush1.bf16.msra.mxu0 %v1568
        %2164 = vmatprep.subr.bf16.mxu0 %v1575
        %2165 = vmatpush1.bf16.msra.mxu0 %v1574
        %2166 = vmatprep.subr.bf16.mxu0 %v1581
        %2167 = vmatpush1.bf16.msra.mxu0 %v1580
        %2168 = vmatprep.subr.bf16.mxu0 %v1587
        %2169 = vmatpush1.bf16.msra.mxu0 %v1586
        %2170 = vmatprep.mubr.bf16.mxu0 %v211
        %2171 = vmatmul.mubr.bf16.gmra.mrb[0].mxu0 %v210
        %v2172 = vpop.f32.mrb[0].mxu0
        %v2173 = vadd.f32 %v2132, %v2172
        %v2174 = vpop.f32.mrb[0].mxu0
        %v2175 = vadd.f32 %v2134, %v2174
        %v2176 = vpop.f32.mrb[0].mxu0
        %v2177 = vpop.f32.mrb[0].mxu0
        %2178 = vdwg.mxu0
        %2179 = vmatprep.subr.bf16.mxu0 %v1593
        %2180 = vmatpush1.bf16.msra.mxu0 %v1592
        %2181 = vmatprep.subr.bf16.mxu0 %v1599
        %2182 = vmatpush1.bf16.msra.mxu0 %v1598
        %2183 = vmatprep.subr.bf16.mxu0 %v1605
        %2184 = vmatpush1.bf16.msra.mxu0 %v1604
        %2185 = vmatprep.subr.bf16.mxu0 %v1611
        %2186 = vmatpush1.bf16.msra.mxu0 %v1610
        %2187 = vmatprep.subr.bf16.mxu0 %v1617
        %2188 = vmatpush1.bf16.msra.mxu0 %v1616
        %2189 = vmatprep.subr.bf16.mxu0 %v1623
        %2190 = vmatpush1.bf16.msra.mxu0 %v1622
        %2191 = vmatprep.subr.bf16.mxu0 %v1629
        %2192 = vmatpush1.bf16.msra.mxu0 %v1628
        %2193 = vmatprep.subr.bf16.mxu0 %v1635
        %2194 = vmatpush1.bf16.msra.mxu0 %v1634
        %2195 = vmatprep.subr.bf16.mxu0 %v1641
        %2196 = vmatpush1.bf16.msra.mxu0 %v1640
        %2197 = vmatprep.subr.bf16.mxu0 %v1647
        %2198 = vmatpush1.bf16.msra.mxu0 %v1646
        %2199 = vmatprep.subr.bf16.mxu0 %v1653
        %2200 = vmatpush1.bf16.msra.mxu0 %v1652
        %2201 = vmatprep.subr.bf16.mxu0 %v1659
        %2202 = vmatpush1.bf16.msra.mxu0 %v1658
        %2203 = vmatprep.subr.bf16.mxu0 %v1665
        %2204 = vmatpush1.bf16.msra.mxu0 %v1664
        %2205 = vmatprep.subr.bf16.mxu0 %v1671
        %2206 = vmatpush1.bf16.msra.mxu0 %v1670
        %2207 = vmatprep.subr.bf16.mxu0 %v1677
        %2208 = vmatpush1.bf16.msra.mxu0 %v1676
        %2209 = vmatprep.subr.bf16.mxu0 %v1683
        %2210 = vmatpush1.bf16.msra.mxu0 %v1682
        %2211 = vmatprep.mubr.bf16.mxu0 %v213
        %2212 = vmatmul.mubr.bf16.gmra.mrb[0].mxu0 %v212
        %v2213 = vpop.f32.mrb[0].mxu0
        %v2214 = vadd.f32 %v2173, %v2213
        %v2215 = vpop.f32.mrb[0].mxu0
        %v2216 = vadd.f32 %v2175, %v2215
        %v2217 = vpop.f32.mrb[0].mxu0
        %v2218 = vpop.f32.mrb[0].mxu0
        %2219 = vdwg.mxu0
        %2220 = vmatprep.subr.bf16.mxu0 %v1403
        %2221 = vmatpush1.bf16.msra.mxu0 %v1402
        %2222 = vmatprep.subr.bf16.mxu0 %v1409
        %2223 = vmatpush1.bf16.msra.mxu0 %v1408
        %2224 = vmatprep.subr.bf16.mxu0 %v1415
        %2225 = vmatpush1.bf16.msra.mxu0 %v1414
        %2226 = vmatprep.subr.bf16.mxu0 %v1421
        %2227 = vmatpush1.bf16.msra.mxu0 %v1420
        %2228 = vmatprep.subr.bf16.mxu0 %v1427
        %2229 = vmatpush1.bf16.msra.mxu0 %v1426
        %2230 = vmatprep.subr.bf16.mxu0 %v1433
        %2231 = vmatpush1.bf16.msra.mxu0 %v1432
        %2232 = vmatprep.subr.bf16.mxu0 %v1439
        %2233 = vmatpush1.bf16.msra.mxu0 %v1438
        %2234 = vmatprep.subr.bf16.mxu0 %v1445
        %2235 = vmatpush1.bf16.msra.mxu0 %v1444
        %2236 = vmatprep.subr.bf16.mxu0 %v1451
        %2237 = vmatpush1.bf16.msra.mxu0 %v1450
        %2238 = vmatprep.subr.bf16.mxu0 %v1457
        %2239 = vmatpush1.bf16.msra.mxu0 %v1456
        %2240 = vmatprep.subr.bf16.mxu0 %v1463
        %2241 = vmatpush1.bf16.msra.mxu0 %v1462
        %2242 = vmatprep.subr.bf16.mxu0 %v1469
        %2243 = vmatpush1.bf16.msra.mxu0 %v1468
        %2244 = vmatprep.subr.bf16.mxu0 %v1475
        %2245 = vmatpush1.bf16.msra.mxu0 %v1474
        %2246 = vmatprep.subr.bf16.mxu0 %v1481
        %2247 = vmatpush1.bf16.msra.mxu0 %v1480
        %2248 = vmatprep.subr.bf16.mxu0 %v1487
        %2249 = vmatpush1.bf16.msra.mxu0 %v1486
        %2250 = vmatprep.subr.bf16.mxu0 %v1493
        %2251 = vmatpush1.bf16.msra.mxu0 %v1492
        %2252 = vmatprep.mubr.bf16.mxu0 %v209
        %2253 = vmatmul.mubr.bf16.gmra.mrb[0].mxu0 %v208
        %v2254 = vpop.f32.mrb[0].mxu0
        %v2255 = vadd.f32 %v523, %v2254
        %v2256 = vpop.f32.mrb[0].mxu0
        %v2257 = vadd.f32 %v527, %v2256
        %v2258 = vpop.f32.mrb[0].mxu0
        %v2259 = vpop.f32.mrb[0].mxu0
        %2260 = vdwg.mxu0
        %2261 = vmatprep.subr.bf16.mxu0 %v1499
        %2262 = vmatpush1.bf16.msra.mxu0 %v1498
        %2263 = vmatprep.subr.bf16.mxu0 %v1505
        %2264 = vmatpush1.bf16.msra.mxu0 %v1504
        %2265 = vmatprep.subr.bf16.mxu0 %v1511
        %2266 = vmatpush1.bf16.msra.mxu0 %v1510
        %2267 = vmatprep.subr.bf16.mxu0 %v1517
        %2268 = vmatpush1.bf16.msra.mxu0 %v1516
        %2269 = vmatprep.subr.bf16.mxu0 %v1523
        %2270 = vmatpush1.bf16.msra.mxu0 %v1522
        %2271 = vmatprep.subr.bf16.mxu0 %v1529
        %2272 = vmatpush1.bf16.msra.mxu0 %v1528
        %2273 = vmatprep.subr.bf16.mxu0 %v1535
        %2274 = vmatpush1.bf16.msra.mxu0 %v1534
        %2275 = vmatprep.subr.bf16.mxu0 %v1541
        %2276 = vmatpush1.bf16.msra.mxu0 %v1540
        %2277 = vmatprep.subr.bf16.mxu0 %v1547
        %2278 = vmatpush1.bf16.msra.mxu0 %v1546
        %2279 = vmatprep.subr.bf16.mxu0 %v1553
        %2280 = vmatpush1.bf16.msra.mxu0 %v1552
        %2281 = vmatprep.subr.bf16.mxu0 %v1559
        %2282 = vmatpush1.bf16.msra.mxu0 %v1558
        %2283 = vmatprep.subr.bf16.mxu0 %v1565
        %2284 = vmatpush1.bf16.msra.mxu0 %v1564
        %2285 = vmatprep.subr.bf16.mxu0 %v1571
        %2286 = vmatpush1.bf16.msra.mxu0 %v1570
        %2287 = vmatprep.subr.bf16.mxu0 %v1577
        %2288 = vmatpush1.bf16.msra.mxu0 %v1576
        %2289 = vmatprep.subr.bf16.mxu0 %v1583
        %2290 = vmatpush1.bf16.msra.mxu0 %v1582
        %2291 = vmatprep.subr.bf16.mxu0 %v1589
        %2292 = vmatpush1.bf16.msra.mxu0 %v1588
        %2293 = vmatprep.mubr.bf16.mxu0 %v211
        %2294 = vmatmul.mubr.bf16.gmra.mrb[0].mxu0 %v210
        %v2295 = vpop.f32.mrb[0].mxu0
        %v2296 = vadd.f32 %v2255, %v2295
        %v2297 = vpop.f32.mrb[0].mxu0
        %v2298 = vadd.f32 %v2257, %v2297
        %v2299 = vpop.f32.mrb[0].mxu0
        %v2300 = vpop.f32.mrb[0].mxu0
        %2301 = vdwg.mxu0
        %2302 = vmatprep.subr.bf16.mxu0 %v1595
        %2303 = vmatpush1.bf16.msra.mxu0 %v1594
        %2304 = vmatprep.subr.bf16.mxu0 %v1601
        %2305 = vmatpush1.bf16.msra.mxu0 %v1600
        %2306 = vmatprep.subr.bf16.mxu0 %v1607
        %2307 = vmatpush1.bf16.msra.mxu0 %v1606
        %2308 = vmatprep.subr.bf16.mxu0 %v1613
        %2309 = vmatpush1.bf16.msra.mxu0 %v1612
        %2310 = vmatprep.subr.bf16.mxu0 %v1619
        %2311 = vmatpush1.bf16.msra.mxu0 %v1618
        %2312 = vmatprep.subr.bf16.mxu0 %v1625
        %2313 = vmatpush1.bf16.msra.mxu0 %v1624
        %2314 = vmatprep.subr.bf16.mxu0 %v1631
        %2315 = vmatpush1.bf16.msra.mxu0 %v1630
        %2316 = vmatprep.subr.bf16.mxu0 %v1637
        %2317 = vmatpush1.bf16.msra.mxu0 %v1636
        %2318 = vmatprep.subr.bf16.mxu0 %v1643
        %2319 = vmatpush1.bf16.msra.mxu0 %v1642
        %2320 = vmatprep.subr.bf16.mxu0 %v1649
        %2321 = vmatpush1.bf16.msra.mxu0 %v1648
        %2322 = vmatprep.subr.bf16.mxu0 %v1655
        %2323 = vmatpush1.bf16.msra.mxu0 %v1654
        %2324 = vmatprep.subr.bf16.mxu0 %v1661
        %2325 = vmatpush1.bf16.msra.mxu0 %v1660
        %2326 = vmatprep.subr.bf16.mxu0 %v1667
        %2327 = vmatpush1.bf16.msra.mxu0 %v1666
        %2328 = vmatprep.subr.bf16.mxu0 %v1673
        %2329 = vmatpush1.bf16.msra.mxu0 %v1672
        %2330 = vmatprep.subr.bf16.mxu0 %v1679
        %2331 = vmatpush1.bf16.msra.mxu0 %v1678
        %2332 = vmatprep.subr.bf16.mxu0 %v1685
        %2333 = vmatpush1.bf16.msra.mxu0 %v1684
        %2334 = vmatprep.mubr.bf16.mxu0 %v213
        %2335 = vmatmul.mubr.bf16.gmra.mrb[0].mxu0 %v212
        %v2336 = vpop.f32.mrb[0].mxu0
        %v2337 = vadd.f32 %v2296, %v2336
        %v2338 = vpop.f32.mrb[0].mxu0
        %v2339 = vadd.f32 %v2298, %v2338
        %v2340 = vpop.f32.mrb[0].mxu0
        %v2341 = vpop.f32.mrb[0].mxu0
        %2342 = vdwg.mxu0
        %v2343 = vmul.f32 %v2091, 0.5
        %v2344 = vmul.f32 %v2093, 0.5
        %v2345 = vmul.f32 %v2214, 0.5
        %v2346 = vmul.f32 %v2216, 0.5
        %v2347 = vmul.f32 %v2337, 0.5
        %v2348 = vmul.f32 %v2339, 0.5
        %v2349 = vmul.f32 %v2091, 0.70710677
        %v2350 = vmul.f32 %v2093, 0.70710677
        %v2351 = vmul.f32 %v2214, 0.70710677
        %v2352 = vmul.f32 %v2216, 0.70710677
        %v2353 = vmul.f32 %v2337, 0.70710677
        %v2354 = vmul.f32 %v2339, 0.70710677
        %v2355 = verf.f32.pop %v2349
        %v2356 = verf.f32.pop %v2350
        %v2357 = verf.f32.pop %v2351
        %v2358 = verf.f32.pop %v2352
        %v2359 = verf.f32.pop %v2353
        %v2360 = verf.f32.pop %v2354
        %v2361 = vadd.f32 %v2355, 1.0
        %v2362 = vadd.f32 %v2356, 1.0
        %v2363 = vadd.f32 %v2357, 1.0
        %v2364 = vadd.f32 %v2358, 1.0
        %v2365 = vadd.f32 %v2359, 1.0
        %v2366 = vadd.f32 %v2360, 1.0
        %v2367 = vmul.f32 %v2343, %v2361
        %v2368 = vmul.f32 %v2344, %v2362
        %v2369 = vmul.f32 %v2345, %v2363
        %v2370 = vmul.f32 %v2346, %v2364
        %v2371 = vmul.f32 %v2347, %v2365
        %v2372 = vmul.f32 %v2348, %v2366
        %2373 = vst [vmem:[%s201] sm:$0xff] %v2367
        %2374 = vst [vmem:[%s201 + $0x8] sm:$0xff] %v2368
        %2375 = vst [vmem:[%s201 + $0x10] sm:$0xff] %v2369
        %2376 = vst [vmem:[%s201 + $0x18] sm:$0xff] %v2370
        %2377 = vst [vmem:[%s201 + $0x20] sm:$0xff] %v2371
        %2378 = vst [vmem:[%s201 + $0x28] sm:$0xff] %v2372
        %s2379 = sand.u32 %s97, 1
        %s2380 = scalar_lea.sflag [#allocation4], %s2379
        %s2381 = sand.u32 %s97, 1
        %s2382 = smul.addr %s2381, 48
        %s2383 = scalar_lea.vmem [#allocation7], %s2382
        // Predicated region
        $region41: #{mlp_forward.1} parent=31 // pred_check
          %p2384 = pneg %p107
        $region42: #{mlp_forward.1} parent=31 // pred_check_branch
          %2386 = sbr.rel (%p2384) target = $region44
        $region43: #{mlp_forward.1} parent=31 // pred_region
          %s2388 = ssub.s32 768, 768
          %2389 = vsyncadd %s2380, %s2388
          %s2390 = smul.addr %s21, 6
          %s2391 = smul.addr %s2390, 128
          %s2392 = scalar_lea.hbm %s3, %s2391
          %s2394 = sshll.u32 %s2383, 4
          %s2395 = int_to_ptr.vmem [resolvable:$true] %s2394
          %2397 = dma.vmem_to_hbm [thread:$0]  %s2395, 768, %s2392, %s2380
        $region44: #{mlp_forward.1} parent=31 // pred_fallthru
          _
      $region32: #{mlp_forward.1} parent=5 // pred_fallthru
        _
      %p2398 = scmp.le.s32.totalorder 2, %s16
      // Predicated region
      $region45: #{mlp_forward.1} parent=5 // pred_check
        %p2399 = pneg %p2398
      $region46: #{mlp_forward.1} parent=5 // pred_check_branch
        %2401 = sbr.rel (%p2399) target = $region48
      $region47: #{mlp_forward.1} parent=5 // pred_region
        %s2402 = ssub.s32 %s16, 2
        // Predicated region
        $region49: #{mlp_forward.1} parent=47 // pred_check
          %p2403 = pneg %p113
        $region50: #{mlp_forward.1} parent=47 // pred_check_branch
          %2405 = sbr.rel (%p2403) target = $region52
        $region51: #{mlp_forward.1} parent=47 // pred_region
          %s2406 = sand.u32 %s98, 1
          %s2407 = scalar_lea.sflag [#allocation4], %s2406
          %s2408 = sand.u32 %s98, 1
          %s2409 = smul.addr %s2408, 48
          %s2410 = scalar_lea.vmem [#allocation7], %s2409
          %2411 = dma.done %s2407, 768
        $region52: #{mlp_forward.1} parent=47 // pred_fallthru
          _
      $region48: #{mlp_forward.1} parent=5 // pred_fallthru
        _
    $region6: #{mlp_forward.1} parent=1 // loop_footer
      %s20 = sadd.s32 1, %s16
    $region7: #{mlp_forward.1} parent=1 // loop_footer_branch
      %15 = sbr.rel target = $region3
    $region8: #{mlp_forward.1} parent=1 // loop_exit
      _
    %2412 = vsyncpa [#allocation3], 1
    %s2413 = scalar_lea.sflag [#allocation3], 1
    %2414 = vsyncpa %s2413, 1
    %2415 = vsyncpa [#allocation6], 1
    %2416 = vsyncpa [#allocation4], 1
    %s2417 = scalar_lea.sflag [#allocation4], 1
    %2418 = vsyncpa %s2417, 1

</llo_original>
